<compile_context>
chip_gen: v7x
topology: tpu7x:2x2x1
jax: 0.10.0
libtpu: 0.0.40
codegen_flags: <defaults>
</compile_context>

<pallas_src>
import jax
import jax.numpy as jnp
from jax import lax
from jax.experimental import pallas as pl
from jax.experimental.pallas import tpu as pltpu


# ----------------------------------------------------------------------------
# Fused Pallas kernel
# ----------------------------------------------------------------------------
def _fastfusion_kernel(
    # scalar-prefetch (SMEM): station indices (B,) int32
    s_ref,
    # VMEM inputs
    t_ref,                       # (B, 3) int32: timeslot / dow / weekend indices
    r_ref,                       # (B, 1) f32:  r[:, -1, 0]
    st_tab_ref,                  # (2000, 4H) f32: emb_station  @ W_ih[station]
    ts_tab_ref,                  # (48,   4H) f32: emb_timeslot @ W_ih[timeslot]
    dow_tab_ref,                 # (8,    4H) f32: emb_dow @ W_ih[dow]  (row-padded)
    we_tab_ref,                  # (8,    4H) f32: emb_we  @ W_ih[we]   (row-padded)
    w_r_ref,                     # (1, 4H) f32:  W_ih[r] row
    blstm_ref,                   # (1, 4H) f32:  b_ih + b_hh
    whh_ref,                     # (H, 4H) f32
    w1_ref, b1_ref, w2_ref, b2_ref, w3_ref, b3_ref,   # head (pre-transposed)
    # output
    out_ref,                     # (B, 1) f32
    # VMEM scratch
    st_mat,                      # (B, 4H) gathered station-projected rows
):
    B = out_ref.shape[0]
    H = whh_ref.shape[0]

    dot = lambda a, w: jnp.dot(a, w, preferred_element_type=jnp.float32)

    # ---- 1. Station gather: dynamic row loads from the pre-projected table --
    for b in range(B):
        st_mat[pl.ds(b, 1), :] = st_tab_ref[pl.ds(s_ref[b], 1), :]

    # ---- 2. Tiny-table gathers as one-hot matmuls (indices live in vregs) ---
    t_idx = t_ref[...]                                     # (B, 3) int32

    def onehot_gather(tab_ref, idx_col):
        n = tab_ref.shape[0]
        oh = (lax.broadcasted_iota(jnp.int32, (B, n), 1) == idx_col)
        return dot(oh.astype(jnp.float32), tab_ref[...])   # (B, 4H)

    ts_rows = onehot_gather(ts_tab_ref, t_idx[:, 0:1])
    dow_rows = onehot_gather(dow_tab_ref, t_idx[:, 1:2])
    we_rows = onehot_gather(we_tab_ref, t_idx[:, 2:3])

    # ---- 3. Input projection for LSTM batch column 11 only ------------------
    # xproj[b] = lstm_in[b, 11, :] @ W_ih^T + (b_ih + b_hh), tables pre-projected.
    xproj = (st_mat[...] + ts_rows + dow_rows + we_rows
             + blstm_ref[...] + r_ref[...] * w_r_ref[...])  # (B, 4H), in vregs

    # ---- 4. LSTM recurrence over the B rows (single batch column), unrolled -
    whh = whh_ref[...]                                      # (H, 4H)
    h = jnp.zeros((1, H), jnp.float32)
    c = jnp.zeros((1, H), jnp.float32)
    last_rows = []
    for b in range(B):                                      # static unroll, static slices
        gates = xproj[b:b + 1, :] + dot(h, whh)             # (1, 4H)
        sg = jax.nn.sigmoid(gates)                          # full-tile EUP ops
        tg = jnp.tanh(gates)
        i_g = sg[:, 0 * H:1 * H]
        f_g = sg[:, 1 * H:2 * H]
        g_g = tg[:, 2 * H:3 * H]
        o_g = sg[:, 3 * H:4 * H]
        c = f_g * c + i_g * g_g
        h = o_g * jnp.tanh(c)
        last_rows.append(h)                                 # lstm_out[b, -1, :]
    last = jnp.concatenate(last_rows, axis=0)               # (B, H), stays in vregs

    # ---- 5. Dense head -------------------------------------------------------
    x = jnp.maximum(last, 0.0)                              # relu(dropout(x)); dropout = id (eval)
    a1 = jnp.maximum(dot(x, w1_ref[...]) + b1_ref[...], 0.0)
    a2 = jnp.maximum(dot(a1, w2_ref[...]) + b2_ref[...], 0.0)
    out_ref[...] = jax.nn.sigmoid(dot(a2, w3_ref[...]) + b3_ref[...])


# ----------------------------------------------------------------------------
# Wrapper
# ----------------------------------------------------------------------------
def _vmem_full(shape):
    """Whole-array VMEM block (index map ignores grid index + prefetch refs)."""
    nd = len(shape)
    return pl.BlockSpec(shape, lambda *_: (0,) * nd,
                        memory_space=pltpu.MemorySpace.VMEM)


def prepare_fused_params(params):
    """One-time prep: split W_ih, pre-project embedding tables, pad tiny tables.

    Cache the result alongside the params — NOT per call.
    """
    SDIM = params["emb_station"].shape[1]
    EDIM = params["emb_timeslot"].shape[1]
    wih = params["wih_t"]                                   # (IN, 4H)
    w_st = wih[0:SDIM]
    w_ts = wih[SDIM:SDIM + EDIM]
    w_dow = wih[SDIM + EDIM:SDIM + 2 * EDIM]
    w_we = wih[SDIM + 2 * EDIM:SDIM + 3 * EDIM]
    w_r = wih[SDIM + 3 * EDIM:SDIM + 3 * EDIM + 1]          # (1, 4H)

    def pad_rows(x, n):
        return jnp.pad(x, ((0, n - x.shape[0]), (0, 0)))

    f32 = lambda a: a.astype(jnp.float32)
    return {
        "st_proj": f32(params["emb_station"] @ w_st),       # (2000, 4H)
        "ts_proj": f32(params["emb_timeslot"] @ w_ts),      # (48, 4H)
        "dow_proj": f32(pad_rows(params["emb_dow"] @ w_dow, 8)),  # (8, 4H)
        "we_proj": f32(pad_rows(params["emb_we"] @ w_we, 8)),     # (8, 4H)
        "w_r": f32(w_r),
        "b_lstm": f32(params["b_lstm"]),
        "whh_t": f32(params["whh_t"]),
        "w1": f32(params["w1"]), "b1": f32(params["b1"]),
        "w2": f32(params["w2"]), "b2": f32(params["b2"]),
        "w3": f32(params["w3"]), "b3": f32(params["b3"]),
    }


def fastfusion_forward(fused, r, h, t, s):
    """Forward pass matching Fastfusion.forward (eval mode)."""
    del h  # Fastfusion.forward accepts `h` but never uses it.
    B = r.shape[0]
    H = fused["whh_t"].shape[0]

    s_idx = s[:, 0].astype(jnp.int32)                       # (B,)  scalar prefetch
    t_idx = t.astype(jnp.int32)                             # (B, 3)
    r_last = r[:, -1, 0:1].astype(jnp.float32)              # (B, 1) — only column 11 matters

    vmem_args = (
        t_idx, r_last,
        fused["st_proj"], fused["ts_proj"], fused["dow_proj"], fused["we_proj"],
        fused["w_r"], fused["b_lstm"], fused["whh_t"],
        fused["w1"], fused["b1"], fused["w2"], fused["b2"],
        fused["w3"], fused["b3"],
    )

    grid_spec = pltpu.PrefetchScalarGridSpec(
        num_scalar_prefetch=1,
        grid=(1,),
        in_specs=[_vmem_full(a.shape) for a in vmem_args],
        out_specs=_vmem_full((B, 1)),
        scratch_shapes=[pltpu.VMEM((B, 4 * H), jnp.float32)],
    )

    call = pl.pallas_call(
        _fastfusion_kernel,
        out_shape=jax.ShapeDtypeStruct((B, 1), jnp.float32),
        grid_spec=grid_spec,
        compiler_params=pltpu.CompilerParams(
            dimension_semantics=("arbitrary",)),
    )
    return call(s_idx, *vmem_args)


# ----------------------------------------------------------------------------
# Pure-JAX literal reference (same math as the PyTorch module, eval mode)
# ----------------------------------------------------------------------------
def reference_forward(params, r, h, t, s):
    del h
    station_vec = params["emb_station"][s[:, 0]]
    timeslot_vec = params["emb_timeslot"][t[:, 0]]
    dow_vec = params["emb_dow"][t[:, 1]]
    we_vec = params["emb_we"][t[:, 2]]
    emb = jnp.concatenate([station_vec, timeslot_vec, dow_vec, we_vec], axis=1)
    ncols = r.shape[1]
    emb_rep = jnp.repeat(emb[:, None, :], ncols, axis=1)           # (B, 12, F)
    lstm_in = jnp.concatenate([emb_rep, r.astype(jnp.float32)], axis=2)

    # nn.LSTM default batch_first=False: axis 0 = sequence (length B),
    # axis 1 = batch (the 12 repeated columns).
    H = params["whh_t"].shape[0]
    N = lstm_in.shape[1]

    def step(carry, x_t):                                          # x_t: (N, F+1)
        h_, c_ = carry
        gates = x_t @ params["wih_t"] + h_ @ params["whh_t"] + params["b_lstm"]
        i = jax.nn.sigmoid(gates[:, 0 * H:1 * H])
        f = jax.nn.sigmoid(gates[:, 1 * H:2 * H])
        g = jnp.tanh(gates[:, 2 * H:3 * H])
        o = jax.nn.sigmoid(gates[:, 3 * H:4 * H])
        c_new = f * c_ + i * g
        h_new = o * jnp.tanh(c_new)
        return (h_new, c_new), h_new

    (_, _), lstm_out = lax.scan(
        step, (jnp.zeros((N, H), jnp.float32), jnp.zeros((N, H), jnp.float32)),
        lstm_in)
    last_state = lstm_out[:, -1, :]                                # (B, H)

    x = jax.nn.relu(last_state)                                    # dropout = identity (eval)
    x = jax.nn.relu(x @ params["w1"] + params["b1"])
    x = jax.nn.relu(x @ params["w2"] + params["b2"])
    x = x @ params["w3"] + params["b3"]
    return jax.nn.sigmoid(x)


# ----------------------------------------------------------------------------
# Deterministic parameter init (shapes from Fastfusion.__init__)
# ----------------------------------------------------------------------------
def init_params(key, hidden_size, station_embedding_dim, embedding_dim):
    H = hidden_size
    in_size = station_embedding_dim + 3 * embedding_dim + 1
    ks = iter(jax.random.split(key, 16))

    def nrm(shape, scale=0.1):
        return (scale * jax.random.normal(next(ks), shape)).astype(jnp.float32)

    p = {}
    # LSTM: PyTorch stores weight_ih_l0 (4H, IN), weight_hh_l0 (4H, H),
    # bias_ih_l0 (4H,), bias_hh_l0 (4H,).  We keep the transposed layout and
    # fold the two biases together (gate order i, f, g, o).
    p["wih_t"] = nrm((in_size, 4 * H))
    p["whh_t"] = nrm((H, 4 * H))
    p["b_lstm"] = nrm((1, 4 * H))
    # Linear layers, pre-transposed to (in, out).
    p["w1"], p["b1"] = nrm((H, 128)), nrm((1, 128))
    p["w2"], p["b2"] = nrm((128, 64)), nrm((1, 64))
    p["w3"], p["b3"] = nrm((64, 1)), nrm((1, 1))
    # Embedding tables.
    p["emb_station"] = nrm((2000, station_embedding_dim))
    p["emb_timeslot"] = nrm((48, embedding_dim))
    p["emb_dow"] = nrm((7, embedding_dim))
    p["emb_we"] = nrm((2, embedding_dim))
    return p


# ----------------------------------------------------------------------------
# Main
# ----------------------------------------------------------------------------
if __name__ == "__main__":
    B = 8                 # sublane-aligned batch
    HIDDEN = 32
    STATION_DIM = 16
    EMB_DIM = 8
    NCOLS = 12            # hard-coded by the module: embedding_vecs.repeat((1, 12, 1))

    key = jax.random.PRNGKey(0)
    kp, kr, kh, kt0, kt1, kt2, ks = jax.random.split(key, 7)

    params = init_params(kp, HIDDEN, STATION_DIM, EMB_DIM)
    fused = prepare_fused_params(params)    # cached once, reused across calls

    r = jax.random.normal(kr, (B, NCOLS, 1), dtype=jnp.float32)
    h = jax.random.normal(kh, (B, NCOLS, 1), dtype=jnp.float32)   # unused by forward
    t = jnp.stack([
        jax.random.randint(kt0, (B,), 0, 48),
        jax.random.randint(kt1, (B,), 0, 7),
        jax.random.randint(kt2, (B,), 0, 2),
    ], axis=1).astype(jnp.int32)                                  # (B, 3)
    s = jax.random.randint(ks, (B, 1), 0, 2000).astype(jnp.int32)  # (B, 1)

    out = jax.block_until_ready(fastfusion_forward(fused, r, h, t, s))
    ref = jax.block_until_ready(reference_forward(params, r, h, t, s))

    assert out.shape == (B, 1), out.shape
    assert bool(jnp.all(jnp.isfinite(out)))
    assert jnp.allclose(out, ref, atol=1e-4, rtol=1e-4), (out, ref)

    print("KERNEL_OK")
</pallas_src>

<mosaic_0001>
module attributes {stable_mosaic.version = 11 : i64} {
  func.func @_fastfusion_kernel(%arg0: i32, %arg1: memref<8xi32, #tpu.memory_space<smem>>, %arg2: memref<8x3xi32, #tpu.memory_space<vmem>>, %arg3: memref<8x1xf32, #tpu.memory_space<vmem>>, %arg4: memref<2000x128xf32, #tpu.memory_space<vmem>>, %arg5: memref<48x128xf32, #tpu.memory_space<vmem>>, %arg6: memref<8x128xf32, #tpu.memory_space<vmem>>, %arg7: memref<8x128xf32, #tpu.memory_space<vmem>>, %arg8: memref<1x128xf32, #tpu.memory_space<vmem>>, %arg9: memref<1x128xf32, #tpu.memory_space<vmem>>, %arg10: memref<32x128xf32, #tpu.memory_space<vmem>>, %arg11: memref<32x128xf32, #tpu.memory_space<vmem>>, %arg12: memref<1x128xf32, #tpu.memory_space<vmem>>, %arg13: memref<128x64xf32, #tpu.memory_space<vmem>>, %arg14: memref<1x64xf32, #tpu.memory_space<vmem>>, %arg15: memref<64x1xf32, #tpu.memory_space<vmem>>, %arg16: memref<1x1xf32, #tpu.memory_space<vmem>>, %arg17: memref<8x1xf32, #tpu.memory_space<vmem>>, %arg18: memref<8x128xf32, #tpu.memory_space<vmem>>) attributes {dimension_semantics = [#tpu.dimension_semantics<arbitrary>], iteration_bounds = array<i64: 1>, scalar_prefetch = 1 : i64, scratch_operands = 1 : i64, tpu.core_type = #tpu.core_type<tc>, window_params = [{pipeline_mode = #tpu.pipeline_mode<synchronous>, transform_indices = @transform_0, window_bounds = array<i64: 8, 3>}, {pipeline_mode = #tpu.pipeline_mode<synchronous>, transform_indices = @transform_1, window_bounds = array<i64: 8, 1>}, {pipeline_mode = #tpu.pipeline_mode<synchronous>, transform_indices = @transform_2, window_bounds = array<i64: 2000, 128>}, {pipeline_mode = #tpu.pipeline_mode<synchronous>, transform_indices = @transform_3, window_bounds = array<i64: 48, 128>}, {pipeline_mode = #tpu.pipeline_mode<synchronous>, transform_indices = @transform_4, window_bounds = array<i64: 8, 128>}, {pipeline_mode = #tpu.pipeline_mode<synchronous>, transform_indices = @transform_5, window_bounds = array<i64: 8, 128>}, {pipeline_mode = #tpu.pipeline_mode<synchronous>, transform_indices = @transform_6, window_bounds = array<i64: 1, 128>}, {pipeline_mode = #tpu.pipeline_mode<synchronous>, transform_indices = @transform_7, window_bounds = array<i64: 1, 128>}, {pipeline_mode = #tpu.pipeline_mode<synchronous>, transform_indices = @transform_8, window_bounds = array<i64: 32, 128>}, {pipeline_mode = #tpu.pipeline_mode<synchronous>, transform_indices = @transform_9, window_bounds = array<i64: 32, 128>}, {pipeline_mode = #tpu.pipeline_mode<synchronous>, transform_indices = @transform_10, window_bounds = array<i64: 1, 128>}, {pipeline_mode = #tpu.pipeline_mode<synchronous>, transform_indices = @transform_11, window_bounds = array<i64: 128, 64>}, {pipeline_mode = #tpu.pipeline_mode<synchronous>, transform_indices = @transform_12, window_bounds = array<i64: 1, 64>}, {pipeline_mode = #tpu.pipeline_mode<synchronous>, transform_indices = @transform_13, window_bounds = array<i64: 64, 1>}, {pipeline_mode = #tpu.pipeline_mode<synchronous>, transform_indices = @transform_14, window_bounds = array<i64: 1, 1>}, {pipeline_mode = #tpu.pipeline_mode<synchronous>, transform_indices = @transform_15, window_bounds = array<i64: 8, 1>}]} {
    %c0 = arith.constant 0 : index
    %0 = memref.load %arg1[%c0] : memref<8xi32, #tpu.memory_space<smem>>
    %1 = arith.index_cast %0 : i32 to index
    %c0_0 = arith.constant 0 : index
    %2 = vector.load %arg4[%1, %c0_0] : memref<2000x128xf32, #tpu.memory_space<vmem>>, vector<1x128xf32>
    %c0_1 = arith.constant 0 : index
    %c0_2 = arith.constant 0 : index
    %3 = vector.load %arg18[%c0_1, %c0_2] : memref<8x128xf32, #tpu.memory_space<vmem>>, vector<1x128xf32>
    tpu.vector_store %arg18[%c0_1, %c0_2], %2 {strides = array<i32>} : memref<8x128xf32, #tpu.memory_space<vmem>>, vector<1x128xf32>,
    %c1 = arith.constant 1 : index
    %4 = memref.load %arg1[%c1] : memref<8xi32, #tpu.memory_space<smem>>
    %5 = arith.index_cast %4 : i32 to index
    %c0_3 = arith.constant 0 : index
    %6 = vector.load %arg4[%5, %c0_3] : memref<2000x128xf32, #tpu.memory_space<vmem>>, vector<1x128xf32>
    %c1_4 = arith.constant 1 : index
    %c0_5 = arith.constant 0 : index
    %7 = vector.load %arg18[%c1_4, %c0_5] : memref<8x128xf32, #tpu.memory_space<vmem>>, vector<1x128xf32>
    tpu.vector_store %arg18[%c1_4, %c0_5], %6 {strides = array<i32>} : memref<8x128xf32, #tpu.memory_space<vmem>>, vector<1x128xf32>,
    %c2 = arith.constant 2 : index
    %8 = memref.load %arg1[%c2] : memref<8xi32, #tpu.memory_space<smem>>
    %9 = arith.index_cast %8 : i32 to index
    %c0_6 = arith.constant 0 : index
    %10 = vector.load %arg4[%9, %c0_6] : memref<2000x128xf32, #tpu.memory_space<vmem>>, vector<1x128xf32>
    %c2_7 = arith.constant 2 : index
    %c0_8 = arith.constant 0 : index
    %11 = vector.load %arg18[%c2_7, %c0_8] : memref<8x128xf32, #tpu.memory_space<vmem>>, vector<1x128xf32>
    tpu.vector_store %arg18[%c2_7, %c0_8], %10 {strides = array<i32>} : memref<8x128xf32, #tpu.memory_space<vmem>>, vector<1x128xf32>,
    %c3 = arith.constant 3 : index
    %12 = memref.load %arg1[%c3] : memref<8xi32, #tpu.memory_space<smem>>
    %13 = arith.index_cast %12 : i32 to index
    %c0_9 = arith.constant 0 : index
    %14 = vector.load %arg4[%13, %c0_9] : memref<2000x128xf32, #tpu.memory_space<vmem>>, vector<1x128xf32>
    %c3_10 = arith.constant 3 : index
    %c0_11 = arith.constant 0 : index
    %15 = vector.load %arg18[%c3_10, %c0_11] : memref<8x128xf32, #tpu.memory_space<vmem>>, vector<1x128xf32>
    tpu.vector_store %arg18[%c3_10, %c0_11], %14 {strides = array<i32>} : memref<8x128xf32, #tpu.memory_space<vmem>>, vector<1x128xf32>,
    %c4 = arith.constant 4 : index
    %16 = memref.load %arg1[%c4] : memref<8xi32, #tpu.memory_space<smem>>
    %17 = arith.index_cast %16 : i32 to index
    %c0_12 = arith.constant 0 : index
    %18 = vector.load %arg4[%17, %c0_12] : memref<2000x128xf32, #tpu.memory_space<vmem>>, vector<1x128xf32>
    %c4_13 = arith.constant 4 : index
    %c0_14 = arith.constant 0 : index
    %19 = vector.load %arg18[%c4_13, %c0_14] : memref<8x128xf32, #tpu.memory_space<vmem>>, vector<1x128xf32>
    tpu.vector_store %arg18[%c4_13, %c0_14], %18 {strides = array<i32>} : memref<8x128xf32, #tpu.memory_space<vmem>>, vector<1x128xf32>,
    %c5 = arith.constant 5 : index
    %20 = memref.load %arg1[%c5] : memref<8xi32, #tpu.memory_space<smem>>
    %21 = arith.index_cast %20 : i32 to index
    %c0_15 = arith.constant 0 : index
    %22 = vector.load %arg4[%21, %c0_15] : memref<2000x128xf32, #tpu.memory_space<vmem>>, vector<1x128xf32>
    %c5_16 = arith.constant 5 : index
    %c0_17 = arith.constant 0 : index
    %23 = vector.load %arg18[%c5_16, %c0_17] : memref<8x128xf32, #tpu.memory_space<vmem>>, vector<1x128xf32>
    tpu.vector_store %arg18[%c5_16, %c0_17], %22 {strides = array<i32>} : memref<8x128xf32, #tpu.memory_space<vmem>>, vector<1x128xf32>,
    %c6 = arith.constant 6 : index
    %24 = memref.load %arg1[%c6] : memref<8xi32, #tpu.memory_space<smem>>
    %25 = arith.index_cast %24 : i32 to index
    %c0_18 = arith.constant 0 : index
    %26 = vector.load %arg4[%25, %c0_18] : memref<2000x128xf32, #tpu.memory_space<vmem>>, vector<1x128xf32>
    %c6_19 = arith.constant 6 : index
    %c0_20 = arith.constant 0 : index
    %27 = vector.load %arg18[%c6_19, %c0_20] : memref<8x128xf32, #tpu.memory_space<vmem>>, vector<1x128xf32>
    tpu.vector_store %arg18[%c6_19, %c0_20], %26 {strides = array<i32>} : memref<8x128xf32, #tpu.memory_space<vmem>>, vector<1x128xf32>,
    %c7 = arith.constant 7 : index
    %28 = memref.load %arg1[%c7] : memref<8xi32, #tpu.memory_space<smem>>
    %29 = arith.index_cast %28 : i32 to index
    %c0_21 = arith.constant 0 : index
    %30 = vector.load %arg4[%29, %c0_21] : memref<2000x128xf32, #tpu.memory_space<vmem>>, vector<1x128xf32>
    %c7_22 = arith.constant 7 : index
    %c0_23 = arith.constant 0 : index
    %31 = vector.load %arg18[%c7_22, %c0_23] : memref<8x128xf32, #tpu.memory_space<vmem>>, vector<1x128xf32>
    tpu.vector_store %arg18[%c7_22, %c0_23], %30 {strides = array<i32>} : memref<8x128xf32, #tpu.memory_space<vmem>>, vector<1x128xf32>,
    %c0_24 = arith.constant 0 : index
    %c0_25 = arith.constant 0 : index
    %32 = vector.load %arg2[%c0_24, %c0_25] : memref<8x3xi32, #tpu.memory_space<vmem>>, vector<8x3xi32>
    %33 = vector.extract_strided_slice %32 {offsets = [0, 0], sizes = [8, 1], strides = [1, 1]} : vector<8x3xi32> to vector<8x1xi32>
    %34 = tpu.iota {dimensions = array<i32: 1>} : vector<8x48xi32>
    %35 = vector.broadcast %33 : vector<8x1xi32> to vector<8x48xi32>
    %36 = arith.cmpi eq, %34, %35 : vector<8x48xi32>
    %37 = arith.extui %36 : vector<8x48xi1> to vector<8x48xi32>
    %38 = arith.sitofp %37 : vector<8x48xi32> to vector<8x48xf32>
    %c0_26 = arith.constant 0 : index
    %c0_27 = arith.constant 0 : index
    %39 = vector.load %arg5[%c0_26, %c0_27] : memref<48x128xf32, #tpu.memory_space<vmem>>, vector<48x128xf32>
    %cst = arith.constant dense<0.000000e+00> : vector<8x128xf32>
    %40 = tpu.matmul %38, %39, %cst {dimension_numbers = #tpu.dot_dimension_numbers<[1], [0], [0], [1], [0, 0, 1, 1], [], []>} : vector<8x48xf32>, vector<48x128xf32>, vector<8x128xf32> -> vector<8x128xf32>
    %41 = vector.extract_strided_slice %32 {offsets = [0, 1], sizes = [8, 1], strides = [1, 1]} : vector<8x3xi32> to vector<8x1xi32>
    %42 = tpu.iota {dimensions = array<i32: 1>} : vector<8x8xi32>
    %43 = vector.broadcast %41 : vector<8x1xi32> to vector<8x8xi32>
    %44 = arith.cmpi eq, %42, %43 : vector<8x8xi32>
    %45 = arith.extui %44 : vector<8x8xi1> to vector<8x8xi32>
    %46 = arith.sitofp %45 : vector<8x8xi32> to vector<8x8xf32>
    %c0_28 = arith.constant 0 : index
    %c0_29 = arith.constant 0 : index
    %47 = vector.load %arg6[%c0_28, %c0_29] : memref<8x128xf32, #tpu.memory_space<vmem>>, vector<8x128xf32>
    %cst_30 = arith.constant dense<0.000000e+00> : vector<8x128xf32>
    %48 = tpu.matmul %46, %47, %cst_30 {dimension_numbers = #tpu.dot_dimension_numbers<[1], [0], [0], [1], [0, 0, 1, 1], [], []>} : vector<8x8xf32>, vector<8x128xf32>, vector<8x128xf32> -> vector<8x128xf32>
    %49 = vector.extract_strided_slice %32 {offsets = [0, 2], sizes = [8, 1], strides = [1, 1]} : vector<8x3xi32> to vector<8x1xi32>
    %50 = tpu.iota {dimensions = array<i32: 1>} : vector<8x8xi32>
    %51 = vector.broadcast %49 : vector<8x1xi32> to vector<8x8xi32>
    %52 = arith.cmpi eq, %50, %51 : vector<8x8xi32>
    %53 = arith.extui %52 : vector<8x8xi1> to vector<8x8xi32>
    %54 = arith.sitofp %53 : vector<8x8xi32> to vector<8x8xf32>
    %c0_31 = arith.constant 0 : index
    %c0_32 = arith.constant 0 : index
    %55 = vector.load %arg7[%c0_31, %c0_32] : memref<8x128xf32, #tpu.memory_space<vmem>>, vector<8x128xf32>
    %cst_33 = arith.constant dense<0.000000e+00> : vector<8x128xf32>
    %56 = tpu.matmul %54, %55, %cst_33 {dimension_numbers = #tpu.dot_dimension_numbers<[1], [0], [0], [1], [0, 0, 1, 1], [], []>} : vector<8x8xf32>, vector<8x128xf32>, vector<8x128xf32> -> vector<8x128xf32>
    %c0_34 = arith.constant 0 : index
    %c0_35 = arith.constant 0 : index
    %57 = vector.load %arg18[%c0_34, %c0_35] : memref<8x128xf32, #tpu.memory_space<vmem>>, vector<8x128xf32>
    %58 = arith.addf %57, %40 : vector<8x128xf32>
    %59 = arith.addf %58, %48 : vector<8x128xf32>
    %60 = arith.addf %59, %56 : vector<8x128xf32>
    %c0_36 = arith.constant 0 : index
    %c0_37 = arith.constant 0 : index
    %61 = vector.load %arg9[%c0_36, %c0_37] : memref<1x128xf32, #tpu.memory_space<vmem>>, vector<1x128xf32>
    %62 = vector.broadcast %61 : vector<1x128xf32> to vector<8x128xf32>
    %63 = arith.addf %60, %62 : vector<8x128xf32>
    %c0_38 = arith.constant 0 : index
    %c0_39 = arith.constant 0 : index
    %64 = vector.load %arg3[%c0_38, %c0_39] : memref<8x1xf32, #tpu.memory_space<vmem>>, vector<8x1xf32>
    %c0_40 = arith.constant 0 : index
    %c0_41 = arith.constant 0 : index
    %65 = vector.load %arg8[%c0_40, %c0_41] : memref<1x128xf32, #tpu.memory_space<vmem>>, vector<1x128xf32>
    %66 = vector.broadcast %64 : vector<8x1xf32> to vector<8x128xf32>
    %67 = vector.broadcast %65 : vector<1x128xf32> to vector<8x128xf32>
    %68 = arith.mulf %66, %67 : vector<8x128xf32>
    %69 = arith.addf %63, %68 : vector<8x128xf32>
    %c0_42 = arith.constant 0 : index
    %c0_43 = arith.constant 0 : index
    %70 = vector.load %arg10[%c0_42, %c0_43] : memref<32x128xf32, #tpu.memory_space<vmem>>, vector<32x128xf32>
    %cst_44 = arith.constant 0.000000e+00 : f32
    %71 = vector.broadcast %cst_44 : f32 to vector<1x32xf32>
    %cst_45 = arith.constant 0.000000e+00 : f32
    %72 = vector.broadcast %cst_45 : f32 to vector<1x32xf32>
    %73 = vector.extract_strided_slice %69 {offsets = [0, 0], sizes = [1, 128], strides = [1, 1]} : vector<8x128xf32> to vector<1x128xf32>
    %cst_46 = arith.constant dense<0.000000e+00> : vector<1x128xf32>
    %74 = tpu.matmul %71, %70, %cst_46 {dimension_numbers = #tpu.dot_dimension_numbers<[1], [0], [0], [1], [0, 0, 1, 1], [], []>} : vector<1x32xf32>, vector<32x128xf32>, vector<1x128xf32> -> vector<1x128xf32>
    %75 = arith.addf %73, %74 : vector<1x128xf32>
    %76 = arith.negf %75 : vector<1x128xf32>
    %77 = math.exp %76 : vector<1x128xf32>
    %cst_47 = arith.constant 1.000000e+00 : f32
    %78 = vector.broadcast %cst_47 : f32 to vector<1x128xf32>
    %79 = arith.addf %78, %77 : vector<1x128xf32>
    %80 = arith.divf %78, %79 : vector<1x128xf32>
    %81 = math.tanh %75 : vector<1x128xf32>
    %82 = vector.extract_strided_slice %80 {offsets = [0, 0], sizes = [1, 32], strides = [1, 1]} : vector<1x128xf32> to vector<1x32xf32>
    %83 = vector.extract_strided_slice %80 {offsets = [0, 32], sizes = [1, 32], strides = [1, 1]} : vector<1x128xf32> to vector<1x32xf32>
    %84 = vector.extract_strided_slice %81 {offsets = [0, 64], sizes = [1, 32], strides = [1, 1]} : vector<1x128xf32> to vector<1x32xf32>
    %85 = vector.extract_strided_slice %80 {offsets = [0, 96], sizes = [1, 32], strides = [1, 1]} : vector<1x128xf32> to vector<1x32xf32>
    %86 = arith.mulf %83, %72 : vector<1x32xf32>
    %87 = arith.mulf %82, %84 : vector<1x32xf32>
    %88 = arith.addf %86, %87 : vector<1x32xf32>
    %89 = math.tanh %88 : vector<1x32xf32>
    %90 = arith.mulf %85, %89 : vector<1x32xf32>
    %91 = vector.extract_strided_slice %69 {offsets = [1, 0], sizes = [1, 128], strides = [1, 1]} : vector<8x128xf32> to vector<1x128xf32>
    %cst_48 = arith.constant dense<0.000000e+00> : vector<1x128xf32>
    %92 = tpu.matmul %90, %70, %cst_48 {dimension_numbers = #tpu.dot_dimension_numbers<[1], [0], [0], [1], [0, 0, 1, 1], [], []>} : vector<1x32xf32>, vector<32x128xf32>, vector<1x128xf32> -> vector<1x128xf32>
    %93 = arith.addf %91, %92 : vector<1x128xf32>
    %94 = arith.negf %93 : vector<1x128xf32>
    %95 = math.exp %94 : vector<1x128xf32>
    %cst_49 = arith.constant 1.000000e+00 : f32
    %96 = vector.broadcast %cst_49 : f32 to vector<1x128xf32>
    %97 = arith.addf %96, %95 : vector<1x128xf32>
    %98 = arith.divf %96, %97 : vector<1x128xf32>
    %99 = math.tanh %93 : vector<1x128xf32>
    %100 = vector.extract_strided_slice %98 {offsets = [0, 0], sizes = [1, 32], strides = [1, 1]} : vector<1x128xf32> to vector<1x32xf32>
    %101 = vector.extract_strided_slice %98 {offsets = [0, 32], sizes = [1, 32], strides = [1, 1]} : vector<1x128xf32> to vector<1x32xf32>
    %102 = vector.extract_strided_slice %99 {offsets = [0, 64], sizes = [1, 32], strides = [1, 1]} : vector<1x128xf32> to vector<1x32xf32>
    %103 = vector.extract_strided_slice %98 {offsets = [0, 96], sizes = [1, 32], strides = [1, 1]} : vector<1x128xf32> to vector<1x32xf32>
    %104 = arith.mulf %101, %88 : vector<1x32xf32>
    %105 = arith.mulf %100, %102 : vector<1x32xf32>
    %106 = arith.addf %104, %105 : vector<1x32xf32>
    %107 = math.tanh %106 : vector<1x32xf32>
    %108 = arith.mulf %103, %107 : vector<1x32xf32>
    %109 = vector.extract_strided_slice %69 {offsets = [2, 0], sizes = [1, 128], strides = [1, 1]} : vector<8x128xf32> to vector<1x128xf32>
    %cst_50 = arith.constant dense<0.000000e+00> : vector<1x128xf32>
    %110 = tpu.matmul %108, %70, %cst_50 {dimension_numbers = #tpu.dot_dimension_numbers<[1], [0], [0], [1], [0, 0, 1, 1], [], []>} : vector<1x32xf32>, vector<32x128xf32>, vector<1x128xf32> -> vector<1x128xf32>
    %111 = arith.addf %109, %110 : vector<1x128xf32>
    %112 = arith.negf %111 : vector<1x128xf32>
    %113 = math.exp %112 : vector<1x128xf32>
    %cst_51 = arith.constant 1.000000e+00 : f32
    %114 = vector.broadcast %cst_51 : f32 to vector<1x128xf32>
    %115 = arith.addf %114, %113 : vector<1x128xf32>
    %116 = arith.divf %114, %115 : vector<1x128xf32>
    %117 = math.tanh %111 : vector<1x128xf32>
    %118 = vector.extract_strided_slice %116 {offsets = [0, 0], sizes = [1, 32], strides = [1, 1]} : vector<1x128xf32> to vector<1x32xf32>
    %119 = vector.extract_strided_slice %116 {offsets = [0, 32], sizes = [1, 32], strides = [1, 1]} : vector<1x128xf32> to vector<1x32xf32>
    %120 = vector.extract_strided_slice %117 {offsets = [0, 64], sizes = [1, 32], strides = [1, 1]} : vector<1x128xf32> to vector<1x32xf32>
    %121 = vector.extract_strided_slice %116 {offsets = [0, 96], sizes = [1, 32], strides = [1, 1]} : vector<1x128xf32> to vector<1x32xf32>
    %122 = arith.mulf %119, %106 : vector<1x32xf32>
    %123 = arith.mulf %118, %120 : vector<1x32xf32>
    %124 = arith.addf %122, %123 : vector<1x32xf32>
    %125 = math.tanh %124 : vector<1x32xf32>
    %126 = arith.mulf %121, %125 : vector<1x32xf32>
    %127 = vector.extract_strided_slice %69 {offsets = [3, 0], sizes = [1, 128], strides = [1, 1]} : vector<8x128xf32> to vector<1x128xf32>
    %cst_52 = arith.constant dense<0.000000e+00> : vector<1x128xf32>
    %128 = tpu.matmul %126, %70, %cst_52 {dimension_numbers = #tpu.dot_dimension_numbers<[1], [0], [0], [1], [0, 0, 1, 1], [], []>} : vector<1x32xf32>, vector<32x128xf32>, vector<1x128xf32> -> vector<1x128xf32>
    %129 = arith.addf %127, %128 : vector<1x128xf32>
    %130 = arith.negf %129 : vector<1x128xf32>
    %131 = math.exp %130 : vector<1x128xf32>
    %cst_53 = arith.constant 1.000000e+00 : f32
    %132 = vector.broadcast %cst_53 : f32 to vector<1x128xf32>
    %133 = arith.addf %132, %131 : vector<1x128xf32>
    %134 = arith.divf %132, %133 : vector<1x128xf32>
    %135 = math.tanh %129 : vector<1x128xf32>
    %136 = vector.extract_strided_slice %134 {offsets = [0, 0], sizes = [1, 32], strides = [1, 1]} : vector<1x128xf32> to vector<1x32xf32>
    %137 = vector.extract_strided_slice %134 {offsets = [0, 32], sizes = [1, 32], strides = [1, 1]} : vector<1x128xf32> to vector<1x32xf32>
    %138 = vector.extract_strided_slice %135 {offsets = [0, 64], sizes = [1, 32], strides = [1, 1]} : vector<1x128xf32> to vector<1x32xf32>
    %139 = vector.extract_strided_slice %134 {offsets = [0, 96], sizes = [1, 32], strides = [1, 1]} : vector<1x128xf32> to vector<1x32xf32>
    %140 = arith.mulf %137, %124 : vector<1x32xf32>
    %141 = arith.mulf %136, %138 : vector<1x32xf32>
    %142 = arith.addf %140, %141 : vector<1x32xf32>
    %143 = math.tanh %142 : vector<1x32xf32>
    %144 = arith.mulf %139, %143 : vector<1x32xf32>
    %145 = vector.extract_strided_slice %69 {offsets = [4, 0], sizes = [1, 128], strides = [1, 1]} : vector<8x128xf32> to vector<1x128xf32>
    %cst_54 = arith.constant dense<0.000000e+00> : vector<1x128xf32>
    %146 = tpu.matmul %144, %70, %cst_54 {dimension_numbers = #tpu.dot_dimension_numbers<[1], [0], [0], [1], [0, 0, 1, 1], [], []>} : vector<1x32xf32>, vector<32x128xf32>, vector<1x128xf32> -> vector<1x128xf32>
    %147 = arith.addf %145, %146 : vector<1x128xf32>
    %148 = arith.negf %147 : vector<1x128xf32>
    %149 = math.exp %148 : vector<1x128xf32>
    %cst_55 = arith.constant 1.000000e+00 : f32
    %150 = vector.broadcast %cst_55 : f32 to vector<1x128xf32>
    %151 = arith.addf %150, %149 : vector<1x128xf32>
    %152 = arith.divf %150, %151 : vector<1x128xf32>
    %153 = math.tanh %147 : vector<1x128xf32>
    %154 = vector.extract_strided_slice %152 {offsets = [0, 0], sizes = [1, 32], strides = [1, 1]} : vector<1x128xf32> to vector<1x32xf32>
    %155 = vector.extract_strided_slice %152 {offsets = [0, 32], sizes = [1, 32], strides = [1, 1]} : vector<1x128xf32> to vector<1x32xf32>
    %156 = vector.extract_strided_slice %153 {offsets = [0, 64], sizes = [1, 32], strides = [1, 1]} : vector<1x128xf32> to vector<1x32xf32>
    %157 = vector.extract_strided_slice %152 {offsets = [0, 96], sizes = [1, 32], strides = [1, 1]} : vector<1x128xf32> to vector<1x32xf32>
    %158 = arith.mulf %155, %142 : vector<1x32xf32>
    %159 = arith.mulf %154, %156 : vector<1x32xf32>
    %160 = arith.addf %158, %159 : vector<1x32xf32>
    %161 = math.tanh %160 : vector<1x32xf32>
    %162 = arith.mulf %157, %161 : vector<1x32xf32>
    %163 = vector.extract_strided_slice %69 {offsets = [5, 0], sizes = [1, 128], strides = [1, 1]} : vector<8x128xf32> to vector<1x128xf32>
    %cst_56 = arith.constant dense<0.000000e+00> : vector<1x128xf32>
    %164 = tpu.matmul %162, %70, %cst_56 {dimension_numbers = #tpu.dot_dimension_numbers<[1], [0], [0], [1], [0, 0, 1, 1], [], []>} : vector<1x32xf32>, vector<32x128xf32>, vector<1x128xf32> -> vector<1x128xf32>
    %165 = arith.addf %163, %164 : vector<1x128xf32>
    %166 = arith.negf %165 : vector<1x128xf32>
    %167 = math.exp %166 : vector<1x128xf32>
    %cst_57 = arith.constant 1.000000e+00 : f32
    %168 = vector.broadcast %cst_57 : f32 to vector<1x128xf32>
    %169 = arith.addf %168, %167 : vector<1x128xf32>
    %170 = arith.divf %168, %169 : vector<1x128xf32>
    %171 = math.tanh %165 : vector<1x128xf32>
    %172 = vector.extract_strided_slice %170 {offsets = [0, 0], sizes = [1, 32], strides = [1, 1]} : vector<1x128xf32> to vector<1x32xf32>
    %173 = vector.extract_strided_slice %170 {offsets = [0, 32], sizes = [1, 32], strides = [1, 1]} : vector<1x128xf32> to vector<1x32xf32>
    %174 = vector.extract_strided_slice %171 {offsets = [0, 64], sizes = [1, 32], strides = [1, 1]} : vector<1x128xf32> to vector<1x32xf32>
    %175 = vector.extract_strided_slice %170 {offsets = [0, 96], sizes = [1, 32], strides = [1, 1]} : vector<1x128xf32> to vector<1x32xf32>
    %176 = arith.mulf %173, %160 : vector<1x32xf32>
    %177 = arith.mulf %172, %174 : vector<1x32xf32>
    %178 = arith.addf %176, %177 : vector<1x32xf32>
    %179 = math.tanh %178 : vector<1x32xf32>
    %180 = arith.mulf %175, %179 : vector<1x32xf32>
    %181 = vector.extract_strided_slice %69 {offsets = [6, 0], sizes = [1, 128], strides = [1, 1]} : vector<8x128xf32> to vector<1x128xf32>
    %cst_58 = arith.constant dense<0.000000e+00> : vector<1x128xf32>
    %182 = tpu.matmul %180, %70, %cst_58 {dimension_numbers = #tpu.dot_dimension_numbers<[1], [0], [0], [1], [0, 0, 1, 1], [], []>} : vector<1x32xf32>, vector<32x128xf32>, vector<1x128xf32> -> vector<1x128xf32>
    %183 = arith.addf %181, %182 : vector<1x128xf32>
    %184 = arith.negf %183 : vector<1x128xf32>
    %185 = math.exp %184 : vector<1x128xf32>
    %cst_59 = arith.constant 1.000000e+00 : f32
    %186 = vector.broadcast %cst_59 : f32 to vector<1x128xf32>
    %187 = arith.addf %186, %185 : vector<1x128xf32>
    %188 = arith.divf %186, %187 : vector<1x128xf32>
    %189 = math.tanh %183 : vector<1x128xf32>
    %190 = vector.extract_strided_slice %188 {offsets = [0, 0], sizes = [1, 32], strides = [1, 1]} : vector<1x128xf32> to vector<1x32xf32>
    %191 = vector.extract_strided_slice %188 {offsets = [0, 32], sizes = [1, 32], strides = [1, 1]} : vector<1x128xf32> to vector<1x32xf32>
    %192 = vector.extract_strided_slice %189 {offsets = [0, 64], sizes = [1, 32], strides = [1, 1]} : vector<1x128xf32> to vector<1x32xf32>
    %193 = vector.extract_strided_slice %188 {offsets = [0, 96], sizes = [1, 32], strides = [1, 1]} : vector<1x128xf32> to vector<1x32xf32>
    %194 = arith.mulf %191, %178 : vector<1x32xf32>
    %195 = arith.mulf %190, %192 : vector<1x32xf32>
    %196 = arith.addf %194, %195 : vector<1x32xf32>
    %197 = math.tanh %196 : vector<1x32xf32>
    %198 = arith.mulf %193, %197 : vector<1x32xf32>
    %199 = vector.extract_strided_slice %69 {offsets = [7, 0], sizes = [1, 128], strides = [1, 1]} : vector<8x128xf32> to vector<1x128xf32>
    %cst_60 = arith.constant dense<0.000000e+00> : vector<1x128xf32>
    %200 = tpu.matmul %198, %70, %cst_60 {dimension_numbers = #tpu.dot_dimension_numbers<[1], [0], [0], [1], [0, 0, 1, 1], [], []>} : vector<1x32xf32>, vector<32x128xf32>, vector<1x128xf32> -> vector<1x128xf32>
    %201 = arith.addf %199, %200 : vector<1x128xf32>
    %202 = arith.negf %201 : vector<1x128xf32>
    %203 = math.exp %202 : vector<1x128xf32>
    %cst_61 = arith.constant 1.000000e+00 : f32
    %204 = vector.broadcast %cst_61 : f32 to vector<1x128xf32>
    %205 = arith.addf %204, %203 : vector<1x128xf32>
    %206 = arith.divf %204, %205 : vector<1x128xf32>
    %207 = math.tanh %201 : vector<1x128xf32>
    %208 = vector.extract_strided_slice %206 {offsets = [0, 0], sizes = [1, 32], strides = [1, 1]} : vector<1x128xf32> to vector<1x32xf32>
    %209 = vector.extract_strided_slice %206 {offsets = [0, 32], sizes = [1, 32], strides = [1, 1]} : vector<1x128xf32> to vector<1x32xf32>
    %210 = vector.extract_strided_slice %207 {offsets = [0, 64], sizes = [1, 32], strides = [1, 1]} : vector<1x128xf32> to vector<1x32xf32>
    %211 = vector.extract_strided_slice %206 {offsets = [0, 96], sizes = [1, 32], strides = [1, 1]} : vector<1x128xf32> to vector<1x32xf32>
    %212 = arith.mulf %209, %196 : vector<1x32xf32>
    %213 = arith.mulf %208, %210 : vector<1x32xf32>
    %214 = arith.addf %212, %213 : vector<1x32xf32>
    %215 = math.tanh %214 : vector<1x32xf32>
    %216 = arith.mulf %211, %215 : vector<1x32xf32>
    %217 = tpu.concatenate %90, %108, %126, %144, %162, %180, %198, %216 in 0 : vector<1x32xf32>, vector<1x32xf32>, vector<1x32xf32>, vector<1x32xf32>, vector<1x32xf32>, vector<1x32xf32>, vector<1x32xf32>, vector<1x32xf32> -> vector<8x32xf32>
    %cst_62 = arith.constant 0.000000e+00 : f32
    %218 = vector.broadcast %cst_62 : f32 to vector<8x32xf32>
    %219 = arith.maximumf %217, %218 : vector<8x32xf32>
    %c0_63 = arith.constant 0 : index
    %c0_64 = arith.constant 0 : index
    %220 = vector.load %arg11[%c0_63, %c0_64] : memref<32x128xf32, #tpu.memory_space<vmem>>, vector<32x128xf32>
    %cst_65 = arith.constant dense<0.000000e+00> : vector<8x128xf32>
    %221 = tpu.matmul %219, %220, %cst_65 {dimension_numbers = #tpu.dot_dimension_numbers<[1], [0], [0], [1], [0, 0, 1, 1], [], []>} : vector<8x32xf32>, vector<32x128xf32>, vector<8x128xf32> -> vector<8x128xf32>
    %c0_66 = arith.constant 0 : index
    %c0_67 = arith.constant 0 : index
    %222 = vector.load %arg12[%c0_66, %c0_67] : memref<1x128xf32, #tpu.memory_space<vmem>>, vector<1x128xf32>
    %223 = vector.broadcast %222 : vector<1x128xf32> to vector<8x128xf32>
    %224 = arith.addf %221, %223 : vector<8x128xf32>
    %cst_68 = arith.constant 0.000000e+00 : f32
    %225 = vector.broadcast %cst_68 : f32 to vector<8x128xf32>
    %226 = arith.maximumf %224, %225 : vector<8x128xf32>
    %c0_69 = arith.constant 0 : index
    %c0_70 = arith.constant 0 : index
    %227 = vector.load %arg13[%c0_69, %c0_70] : memref<128x64xf32, #tpu.memory_space<vmem>>, vector<128x64xf32>
    %cst_71 = arith.constant dense<0.000000e+00> : vector<8x64xf32>
    %228 = tpu.matmul %226, %227, %cst_71 {dimension_numbers = #tpu.dot_dimension_numbers<[1], [0], [0], [1], [0, 0, 1, 1], [], []>} : vector<8x128xf32>, vector<128x64xf32>, vector<8x64xf32> -> vector<8x64xf32>
    %c0_72 = arith.constant 0 : index
    %c0_73 = arith.constant 0 : index
    %229 = vector.load %arg14[%c0_72, %c0_73] : memref<1x64xf32, #tpu.memory_space<vmem>>, vector<1x64xf32>
    %230 = vector.broadcast %229 : vector<1x64xf32> to vector<8x64xf32>
    %231 = arith.addf %228, %230 : vector<8x64xf32>
    %cst_74 = arith.constant 0.000000e+00 : f32
    %232 = vector.broadcast %cst_74 : f32 to vector<8x64xf32>
    %233 = arith.maximumf %231, %232 : vector<8x64xf32>
    %c0_75 = arith.constant 0 : index
    %c0_76 = arith.constant 0 : index
    %234 = vector.load %arg15[%c0_75, %c0_76] : memref<64x1xf32, #tpu.memory_space<vmem>>, vector<64x1xf32>
    %cst_77 = arith.constant dense<0.000000e+00> : vector<8x1xf32>
    %235 = tpu.matmul %233, %234, %cst_77 {dimension_numbers = #tpu.dot_dimension_numbers<[1], [0], [0], [1], [0, 0, 1, 1], [], []>} : vector<8x64xf32>, vector<64x1xf32>, vector<8x1xf32> -> vector<8x1xf32>
    %c0_78 = arith.constant 0 : index
    %c0_79 = arith.constant 0 : index
    %236 = vector.load %arg16[%c0_78, %c0_79] : memref<1x1xf32, #tpu.memory_space<vmem>>, vector<1x1xf32>
    %237 = vector.broadcast %236 : vector<1x1xf32> to vector<8x1xf32>
    %238 = arith.addf %235, %237 : vector<8x1xf32>
    %239 = arith.negf %238 : vector<8x1xf32>
    %240 = math.exp %239 : vector<8x1xf32>
    %cst_80 = arith.constant 1.000000e+00 : f32
    %241 = vector.broadcast %cst_80 : f32 to vector<8x1xf32>
    %242 = arith.addf %241, %240 : vector<8x1xf32>
    %243 = arith.divf %241, %242 : vector<8x1xf32>
    %c0_81 = arith.constant 0 : index
    %c0_82 = arith.constant 0 : index
    %244 = vector.load %arg17[%c0_81, %c0_82] : memref<8x1xf32, #tpu.memory_space<vmem>>, vector<8x1xf32>
    tpu.vector_store %arg17[%c0_81, %c0_82], %243 {strides = array<i32>} : memref<8x1xf32, #tpu.memory_space<vmem>>, vector<8x1xf32>,
    return
  }
  func.func @transform_0(%arg0: i32, %arg1: memref<8xi32, #tpu.memory_space<smem>>) -> (i32, i32) {
    %c0_i32 = arith.constant 0 : i32
    %c0_i32_0 = arith.constant 0 : i32
    %c0_i32_1 = arith.constant 0 : i32
    return %c0_i32, %c0_i32_0 : i32, i32
  }
  func.func @transform_1(%arg0: i32, %arg1: memref<8xi32, #tpu.memory_space<smem>>) -> (i32, i32) {
    %c0_i32 = arith.constant 0 : i32
    %c0_i32_0 = arith.constant 0 : i32
    %c0_i32_1 = arith.constant 0 : i32
    return %c0_i32, %c0_i32_0 : i32, i32
  }
  func.func @transform_2(%arg0: i32, %arg1: memref<8xi32, #tpu.memory_space<smem>>) -> (i32, i32) {
    %c0_i32 = arith.constant 0 : i32
    %c0_i32_0 = arith.constant 0 : i32
    %c0_i32_1 = arith.constant 0 : i32
    return %c0_i32, %c0_i32_0 : i32, i32
  }
  func.func @transform_3(%arg0: i32, %arg1: memref<8xi32, #tpu.memory_space<smem>>) -> (i32, i32) {
    %c0_i32 = arith.constant 0 : i32
    %c0_i32_0 = arith.constant 0 : i32
    %c0_i32_1 = arith.constant 0 : i32
    return %c0_i32, %c0_i32_0 : i32, i32
  }
  func.func @transform_4(%arg0: i32, %arg1: memref<8xi32, #tpu.memory_space<smem>>) -> (i32, i32) {
    %c0_i32 = arith.constant 0 : i32
    %c0_i32_0 = arith.constant 0 : i32
    %c0_i32_1 = arith.constant 0 : i32
    return %c0_i32, %c0_i32_0 : i32, i32
  }
  func.func @transform_5(%arg0: i32, %arg1: memref<8xi32, #tpu.memory_space<smem>>) -> (i32, i32) {
    %c0_i32 = arith.constant 0 : i32
    %c0_i32_0 = arith.constant 0 : i32
    %c0_i32_1 = arith.constant 0 : i32
    return %c0_i32, %c0_i32_0 : i32, i32
  }
  func.func @transform_6(%arg0: i32, %arg1: memref<8xi32, #tpu.memory_space<smem>>) -> (i32, i32) {
    %c0_i32 = arith.constant 0 : i32
    %c0_i32_0 = arith.constant 0 : i32
    %c0_i32_1 = arith.constant 0 : i32
    return %c0_i32, %c0_i32_0 : i32, i32
  }
  func.func @transform_7(%arg0: i32, %arg1: memref<8xi32, #tpu.memory_space<smem>>) -> (i32, i32) {
    %c0_i32 = arith.constant 0 : i32
    %c0_i32_0 = arith.constant 0 : i32
    %c0_i32_1 = arith.constant 0 : i32
    return %c0_i32, %c0_i32_0 : i32, i32
  }
  func.func @transform_8(%arg0: i32, %arg1: memref<8xi32, #tpu.memory_space<smem>>) -> (i32, i32) {
    %c0_i32 = arith.constant 0 : i32
    %c0_i32_0 = arith.constant 0 : i32
    %c0_i32_1 = arith.constant 0 : i32
    return %c0_i32, %c0_i32_0 : i32, i32
  }
  func.func @transform_9(%arg0: i32, %arg1: memref<8xi32, #tpu.memory_space<smem>>) -> (i32, i32) {
    %c0_i32 = arith.constant 0 : i32
    %c0_i32_0 = arith.constant 0 : i32
    %c0_i32_1 = arith.constant 0 : i32
    return %c0_i32, %c0_i32_0 : i32, i32
  }
  func.func @transform_10(%arg0: i32, %arg1: memref<8xi32, #tpu.memory_space<smem>>) -> (i32, i32) {
    %c0_i32 = arith.constant 0 : i32
    %c0_i32_0 = arith.constant 0 : i32
    %c0_i32_1 = arith.constant 0 : i32
    return %c0_i32, %c0_i32_0 : i32, i32
  }
  func.func @transform_11(%arg0: i32, %arg1: memref<8xi32, #tpu.memory_space<smem>>) -> (i32, i32) {
    %c0_i32 = arith.constant 0 : i32
    %c0_i32_0 = arith.constant 0 : i32
    %c0_i32_1 = arith.constant 0 : i32
    return %c0_i32, %c0_i32_0 : i32, i32
  }
  func.func @transform_12(%arg0: i32, %arg1: memref<8xi32, #tpu.memory_space<smem>>) -> (i32, i32) {
    %c0_i32 = arith.constant 0 : i32
    %c0_i32_0 = arith.constant 0 : i32
    %c0_i32_1 = arith.constant 0 : i32
    return %c0_i32, %c0_i32_0 : i32, i32
  }
  func.func @transform_13(%arg0: i32, %arg1: memref<8xi32, #tpu.memory_space<smem>>) -> (i32, i32) {
    %c0_i32 = arith.constant 0 : i32
    %c0_i32_0 = arith.constant 0 : i32
    %c0_i32_1 = arith.constant 0 : i32
    return %c0_i32, %c0_i32_0 : i32, i32
  }
  func.func @transform_14(%arg0: i32, %arg1: memref<8xi32, #tpu.memory_space<smem>>) -> (i32, i32) {
    %c0_i32 = arith.constant 0 : i32
    %c0_i32_0 = arith.constant 0 : i32
    %c0_i32_1 = arith.constant 0 : i32
    return %c0_i32, %c0_i32_0 : i32, i32
  }
  func.func @transform_15(%arg0: i32, %arg1: memref<8xi32, #tpu.memory_space<smem>>) -> (i32, i32) {
    %c0_i32 = arith.constant 0 : i32
    %c0_i32_0 = arith.constant 0 : i32
    %c0_i32_1 = arith.constant 0 : i32
    return %c0_i32, %c0_i32_0 : i32, i32
  }
}

</mosaic_0001>

<llo_original>
// kernel: tpu_custom_call.1
$region0: #{tpu_custom_call.1}
  #allocation0 [shape = 'u32[]', space=smem, size = 0x4, offset = 0x4, fixed_abs, tag = 'smem constant byte address 0x4 - core index']
  #allocation1 [shape = 'u32[144,128]{1,0:T(1,128)}', space=vmem, size = 0x12000, scoped, tag = 'internal scratch']
  #allocation2 [shape = 'f32[8,128]{1,0:T(8,128)}', space=vmem, size = 0x1000, scoped, tag = 'scratch operand']
  #allocation3 [shape = 's32[1]{0}', space=sflag, size = 0x4, scoped, tag = 'scoped memory for tpu_custom_call.1']
  #allocation4 [shape = 'u8[512]{0}', space=smem, size = 0x200, scoped, tag = 'prefetched SMEM operand 0']
  #allocation5 [shape = 'f32[1,1]{1,0:T(1,128)S(1)}', space=vmem, size = 0x200, scoped, tag = 'scoped memory for tpu_custom_call.1']
  %s0 = inlined_call_operand.vmem [shape: s32[8], index: 0, kind: input, shape index: {}]
  %s1 = inlined_call_operand.vmem [shape: s32[8,3], index: 1, kind: input, shape index: {}]
  %s2 = inlined_call_operand.vmem [shape: f32[8,1], index: 2, kind: input, shape index: {}]
  %s3 = inlined_call_operand.hbm [shape: f32[2000,128], index: 3, kind: input, shape index: {}]
  %s4 = inlined_call_operand.vmem [shape: f32[48,128], index: 4, kind: input, shape index: {}]
  %s5 = inlined_call_operand.vmem [shape: f32[8,128], index: 5, kind: input, shape index: {}]
  %s6 = inlined_call_operand.vmem [shape: f32[8,128], index: 6, kind: input, shape index: {}]
  %s7 = inlined_call_operand.vmem [shape: f32[1,128], index: 7, kind: input, shape index: {}]
  %s8 = inlined_call_operand.vmem [shape: f32[1,128], index: 8, kind: input, shape index: {}]
  %s9 = inlined_call_operand.vmem [shape: f32[32,128], index: 9, kind: input, shape index: {}]
  %s10 = inlined_call_operand.vmem [shape: f32[32,128], index: 10, kind: input, shape index: {}]
  %s11 = inlined_call_operand.vmem [shape: f32[1,128], index: 11, kind: input, shape index: {}]
  %s12 = inlined_call_operand.vmem [shape: f32[128,64], index: 12, kind: input, shape index: {}]
  %s13 = inlined_call_operand.vmem [shape: f32[1,64], index: 13, kind: input, shape index: {}]
  %s14 = inlined_call_operand.vmem [shape: f32[64,1], index: 14, kind: input, shape index: {}]
  %s15 = inlined_call_operand.<no memory space> [shape: f32[1,1], index: 15, kind: input, shape index: {}]
  %s16 = inlined_call_operand.vmem [shape: f32[8,1], index: 16, kind: output, shape index: {}]
  %s17 = sld [smem:[#allocation0]]
  $region74: #{tpu_custom_call.1} parent=0
    _
  %s19 = ssub.s32 1, %s17
  %s20 = scalar_select 0, %s19, %s17
  %s21 = sshll.u32 %s0, 4
  %s22 = int_to_ptr.vmem [resolvable:$true] %s21
  %24 = dma.vmem_to_smem %s22, 16, [#allocation4], [#allocation3]
  %v25 = vstv %s15
  %26 = vst [vmem:[#allocation5] sm:$0x1] %v25
  %27 = dma.done [#allocation3], 16
  %28 = sfence
  $region1: #{tpu_custom_call.1} parent=0
    #allocation6 [shape = 'u8[1024000]{0}', space=vmem, size = 0xfa000, scoped, tag = 'input window, operand 3, single buffered']
    #allocation7 [shape = 's32[1]{0}', space=sflag, size = 0x4, scoped, tag = 'scoped memory for tpu_custom_call.1']
    %29 = vsyncpa [#allocation7], 0
    // Predicated region
    $region2: #{tpu_custom_call.1} parent=1 // pred_check
      _
    $region3: #{tpu_custom_call.1} parent=1 // pred_check_branch
      %31 = sbr.rel (0) target = $region5
    $region4: #{tpu_custom_call.1} parent=1 // pred_region
      _
    $region5: #{tpu_custom_call.1} parent=1 // pred_fallthru
      _
    // Predicated region
    $region6: #{tpu_custom_call.1} parent=1 // pred_check
      _
    $region7: #{tpu_custom_call.1} parent=1 // pred_check_branch
      %33 = sbr.rel (0) target = $region9
    $region8: #{tpu_custom_call.1} parent=1 // pred_region
      _
    $region9: #{tpu_custom_call.1} parent=1 // pred_fallthru
      _
    // Predicated region
    $region10: #{tpu_custom_call.1} parent=1 // pred_check
      _
    $region11: #{tpu_custom_call.1} parent=1 // pred_check_branch
      %35 = sbr.rel (0) target = $region13
    $region12: #{tpu_custom_call.1} parent=1 // pred_region
      %s37 = ssub.s32 32000, 32000
      %38 = vsyncadd [#allocation7], %s37
      %s39 = sshll.u32 [#allocation6], 4
      %s40 = int_to_ptr.vmem [resolvable:$true] %s39
      %45 = dma.hbm_to_vmem [thread:$0]  %s3, 32000, %s40, [#allocation7], 128, 128, 8
    $region13: #{tpu_custom_call.1} parent=1 // pred_fallthru
      _
    // Predicated region
    $region14: #{tpu_custom_call.1} parent=1 // pred_check
      _
    $region15: #{tpu_custom_call.1} parent=1 // pred_check_branch
      %47 = sbr.rel (0) target = $region17
    $region16: #{tpu_custom_call.1} parent=1 // pred_region
      _
    $region17: #{tpu_custom_call.1} parent=1 // pred_fallthru
      _
    // Predicated region
    $region18: #{tpu_custom_call.1} parent=1 // pred_check
      _
    $region19: #{tpu_custom_call.1} parent=1 // pred_check_branch
      %49 = sbr.rel (0) target = $region21
    $region20: #{tpu_custom_call.1} parent=1 // pred_region
      _
    $region21: #{tpu_custom_call.1} parent=1 // pred_fallthru
      _
    // Predicated region
    $region22: #{tpu_custom_call.1} parent=1 // pred_check
      _
    $region23: #{tpu_custom_call.1} parent=1 // pred_check_branch
      %51 = sbr.rel (0) target = $region25
    $region24: #{tpu_custom_call.1} parent=1 // pred_region
      _
    $region25: #{tpu_custom_call.1} parent=1 // pred_fallthru
      _
    // Predicated region
    $region26: #{tpu_custom_call.1} parent=1 // pred_check
      _
    $region27: #{tpu_custom_call.1} parent=1 // pred_check_branch
      %53 = sbr.rel (0) target = $region29
    $region28: #{tpu_custom_call.1} parent=1 // pred_region
      _
    $region29: #{tpu_custom_call.1} parent=1 // pred_fallthru
      _
    // Predicated region
    $region30: #{tpu_custom_call.1} parent=1 // pred_check
      _
    $region31: #{tpu_custom_call.1} parent=1 // pred_check_branch
      %55 = sbr.rel (0) target = $region33
    $region32: #{tpu_custom_call.1} parent=1 // pred_region
      _
    $region33: #{tpu_custom_call.1} parent=1 // pred_fallthru
      _
    // Predicated region
    $region34: #{tpu_custom_call.1} parent=1 // pred_check
      _
    $region35: #{tpu_custom_call.1} parent=1 // pred_check_branch
      %57 = sbr.rel (0) target = $region37
    $region36: #{tpu_custom_call.1} parent=1 // pred_region
      _
    $region37: #{tpu_custom_call.1} parent=1 // pred_fallthru
      _
    // Predicated region
    $region38: #{tpu_custom_call.1} parent=1 // pred_check
      _
    $region39: #{tpu_custom_call.1} parent=1 // pred_check_branch
      %59 = sbr.rel (0) target = $region41
    $region40: #{tpu_custom_call.1} parent=1 // pred_region
      _
    $region41: #{tpu_custom_call.1} parent=1 // pred_fallthru
      _
    // Predicated region
    $region42: #{tpu_custom_call.1} parent=1 // pred_check
      _
    $region43: #{tpu_custom_call.1} parent=1 // pred_check_branch
      %61 = sbr.rel (0) target = $region45
    $region44: #{tpu_custom_call.1} parent=1 // pred_region
      _
    $region45: #{tpu_custom_call.1} parent=1 // pred_fallthru
      _
    // Predicated region
    $region46: #{tpu_custom_call.1} parent=1 // pred_check
      _
    $region47: #{tpu_custom_call.1} parent=1 // pred_check_branch
      %63 = sbr.rel (0) target = $region49
    $region48: #{tpu_custom_call.1} parent=1 // pred_region
      _
    $region49: #{tpu_custom_call.1} parent=1 // pred_fallthru
      _
    // Predicated region
    $region50: #{tpu_custom_call.1} parent=1 // pred_check
      _
    $region51: #{tpu_custom_call.1} parent=1 // pred_check_branch
      %65 = sbr.rel (0) target = $region53
    $region52: #{tpu_custom_call.1} parent=1 // pred_region
      _
    $region53: #{tpu_custom_call.1} parent=1 // pred_fallthru
      _
    // Predicated region
    $region54: #{tpu_custom_call.1} parent=1 // pred_check
      _
    $region55: #{tpu_custom_call.1} parent=1 // pred_check_branch
      %67 = sbr.rel (0) target = $region57
    $region56: #{tpu_custom_call.1} parent=1 // pred_region
      _
    $region57: #{tpu_custom_call.1} parent=1 // pred_fallthru
      _
    // Predicated region
    $region58: #{tpu_custom_call.1} parent=1 // pred_check
      _
    $region59: #{tpu_custom_call.1} parent=1 // pred_check_branch
      %69 = sbr.rel (0) target = $region61
    $region60: #{tpu_custom_call.1} parent=1 // pred_region
      _
    $region61: #{tpu_custom_call.1} parent=1 // pred_fallthru
      _
    // Predicated region
    $region62: #{tpu_custom_call.1} parent=1 // pred_check
      _
    $region63: #{tpu_custom_call.1} parent=1 // pred_check_branch
      %71 = sbr.rel (0) target = $region65
    $region64: #{tpu_custom_call.1} parent=1 // pred_region
      %72 = dma.done [#allocation7], 32000
    $region65: #{tpu_custom_call.1} parent=1 // pred_fallthru
      _
    %s73 = sld [smem:[#allocation4]]
    %s74 = scalar_lea.vmem [#allocation6], %s73
    %v75 = vld [vmem:[%s74] sm:$0x1]
    %76 = vst [vmem:[#allocation2] sm:$0x1] %v75
    %s77 = sld [smem:[#allocation4 + $0x1]]
    %s78 = scalar_lea.vmem [#allocation6], %s77
    %v79 = vld [vmem:[%s78] sm:$0x1]
    %80 = vst [vmem:[#allocation2 + $0x1] sm:$0x1] %v79
    %s81 = sld [smem:[#allocation4 + $0x2]]
    %s82 = scalar_lea.vmem [#allocation6], %s81
    %v83 = vld [vmem:[%s82] sm:$0x1]
    %84 = vst [vmem:[#allocation2 + $0x2] sm:$0x1] %v83
    %s85 = sld [smem:[#allocation4 + $0x3]]
    %s86 = scalar_lea.vmem [#allocation6], %s85
    %v87 = vld [vmem:[%s86] sm:$0x1]
    %88 = vst [vmem:[#allocation2 + $0x3] sm:$0x1] %v87
    %s89 = sld [smem:[#allocation4 + $0x4]]
    %s90 = scalar_lea.vmem [#allocation6], %s89
    %v91 = vld [vmem:[%s90] sm:$0x1]
    %92 = vst [vmem:[#allocation2 + $0x4] sm:$0x1] %v91
    %s93 = sld [smem:[#allocation4 + $0x5]]
    %s94 = scalar_lea.vmem [#allocation6], %s93
    %v95 = vld [vmem:[%s94] sm:$0x1]
    %96 = vst [vmem:[#allocation2 + $0x5] sm:$0x1] %v95
    %s97 = sld [smem:[#allocation4 + $0x6]]
    %s98 = scalar_lea.vmem [#allocation6], %s97
    %v99 = vld [vmem:[%s98] sm:$0x1]
    %100 = vst [vmem:[#allocation2 + $0x6] sm:$0x1] %v99
    %s101 = sld [smem:[#allocation4 + $0x7]]
    %s102 = scalar_lea.vmem [#allocation6], %s101
    %v103 = vld [vmem:[%s102] sm:$0x1]
    %104 = vst [vmem:[#allocation2 + $0x7] sm:$0x1] %v103
    %v105 = vld [vmem:[%s1] sm:$0xff]
    %v106 = vlaneseq
    %v107 = vand.u32 %v106, 127
    %108 = vset.pattern.permute.xlu0 0
    %109 = vperm.xlu0 %108, %v105
    %v110 = vpop.permute.xlu0 %109
    %vm111 = vcmp.eq.s32.totalorder %v107, %v110
    %v112 = vsel %vm111, 1, 0
    %v113 = vcvt.s32.f32 %v112
    %v114 = vld [vmem:[%s4] sm:$0xff]
    %v115 = vld [vmem:[%s4 + $0x8] sm:$0xff]
    %v116 = vld [vmem:[%s4 + $0x10] sm:$0xff]
    %v117 = vld [vmem:[%s4 + $0x18] sm:$0xff]
    %v118 = vld [vmem:[%s4 + $0x20] sm:$0xff]
    %v119 = vld [vmem:[%s4 + $0x28] sm:$0xff]
    %vm120 = vcmask 392192
    %v122 = vsel %vm120, %v113, 0
    %124 = vmatprep.subr.mxu0 0.0
    %125 = vmatpush1.msra.mxu0 %v114
    %126 = vmatprep.subr.mxu0 0.0
    %127 = vmatpush1.msra.mxu0 %v115
    %128 = vmatprep.subr.mxu0 0.0
    %129 = vmatpush1.msra.mxu0 %v116
    %130 = vmatprep.subr.mxu0 0.0
    %131 = vmatpush1.msra.mxu0 %v117
    %132 = vmatprep.subr.mxu0 0.0
    %133 = vmatpush1.msra.mxu0 %v118
    %134 = vmatprep.subr.mxu0 0.0
    %135 = vmatpush1.msra.mxu0 %v119
    %136 = vmatprep.subr.mxu0 0.0
    %137 = vmatpush1.msra.mxu0 0.0
    %138 = vmatprep.subr.mxu0 0.0
    %139 = vmatpush1.msra.mxu0 0.0
    %140 = vmatprep.subr.mxu0 0.0
    %141 = vmatpush1.msra.mxu0 0.0
    %142 = vmatprep.subr.mxu0 0.0
    %143 = vmatpush1.msra.mxu0 0.0
    %144 = vmatprep.subr.mxu0 0.0
    %145 = vmatpush1.msra.mxu0 0.0
    %146 = vmatprep.subr.mxu0 0.0
    %147 = vmatpush1.msra.mxu0 0.0
    %148 = vmatprep.subr.mxu0 0.0
    %149 = vmatpush1.msra.mxu0 0.0
    %150 = vmatprep.subr.mxu0 0.0
    %151 = vmatpush1.msra.mxu0 0.0
    %152 = vmatprep.subr.mxu0 0.0
    %153 = vmatpush1.msra.mxu0 0.0
    %154 = vmatprep.subr.mxu0 0.0
    %155 = vmatpush1.msra.mxu0 0.0
    %156 = vmatprep.subr.mxu0 0.0
    %157 = vmatpush1.msra.mxu0 0.0
    %158 = vmatprep.subr.mxu0 0.0
    %159 = vmatpush1.msra.mxu0 0.0
    %160 = vmatprep.subr.mxu0 0.0
    %161 = vmatpush1.msra.mxu0 0.0
    %162 = vmatprep.subr.mxu0 0.0
    %163 = vmatpush1.msra.mxu0 0.0
    %164 = vmatprep.subr.mxu0 0.0
    %165 = vmatpush1.msra.mxu0 0.0
    %166 = vmatprep.subr.mxu0 0.0
    %167 = vmatpush1.msra.mxu0 0.0
    %168 = vmatprep.subr.mxu0 0.0
    %169 = vmatpush1.msra.mxu0 0.0
    %170 = vmatprep.subr.mxu0 0.0
    %171 = vmatpush1.msra.mxu0 0.0
    %172 = vmatprep.subr.mxu0 0.0
    %173 = vmatpush1.msra.mxu0 0.0
    %174 = vmatprep.subr.mxu0 0.0
    %175 = vmatpush1.msra.mxu0 0.0
    %176 = vmatprep.subr.mxu0 0.0
    %177 = vmatpush1.msra.mxu0 0.0
    %178 = vmatprep.subr.mxu0 0.0
    %179 = vmatpush1.msra.mxu0 0.0
    %180 = vmatprep.subr.mxu0 0.0
    %181 = vmatpush1.msra.mxu0 0.0
    %182 = vmatprep.subr.mxu0 0.0
    %183 = vmatpush1.msra.mxu0 0.0
    %184 = vmatprep.subr.mxu0 0.0
    %185 = vmatpush1.msra.mxu0 0.0
    %186 = vmatprep.subr.mxu0 0.0
    %187 = vmatpush1.msra.mxu0 0.0
    %188 = vmatprep.mubr.f32.mxu0 0.0
    %189 = vmatmul.mubr.f32.gmra.mrb[0].mxu0 %v122
    %v190 = vpop.f32.mrb[0].mxu0
    %v191 = vadd.f32 0.0, %v190
    %v192 = vpop.f32.mrb[0].mxu0
    %193 = vdwg.mxu0
    %194 = vset.pattern.permute.xlu0 1
    %195 = vperm.xlu0 %194, %v105
    %v196 = vpop.permute.xlu0 %195
    %vm197 = vcmp.eq.s32.totalorder %v107, %v196
    %v198 = vsel %vm197, 1, 0
    %v199 = vcvt.s32.f32 %v198
    %v200 = vld [vmem:[%s5] sm:$0xff]
    %vm201 = vcmask 64512
    %v203 = vsel %vm201, %v199, 0
    %205 = vmatprep.subr.mxu0 0.0
    %206 = vmatpush1.msra.mxu0 %v200
    %207 = vmatprep.subr.mxu0 0.0
    %208 = vmatpush1.msra.mxu0 0.0
    %209 = vmatprep.subr.mxu0 0.0
    %210 = vmatpush1.msra.mxu0 0.0
    %211 = vmatprep.subr.mxu0 0.0
    %212 = vmatpush1.msra.mxu0 0.0
    %213 = vmatprep.subr.mxu0 0.0
    %214 = vmatpush1.msra.mxu0 0.0
    %215 = vmatprep.subr.mxu0 0.0
    %216 = vmatpush1.msra.mxu0 0.0
    %217 = vmatprep.subr.mxu0 0.0
    %218 = vmatpush1.msra.mxu0 0.0
    %219 = vmatprep.subr.mxu0 0.0
    %220 = vmatpush1.msra.mxu0 0.0
    %221 = vmatprep.subr.mxu0 0.0
    %222 = vmatpush1.msra.mxu0 0.0
    %223 = vmatprep.subr.mxu0 0.0
    %224 = vmatpush1.msra.mxu0 0.0
    %225 = vmatprep.subr.mxu0 0.0
    %226 = vmatpush1.msra.mxu0 0.0
    %227 = vmatprep.subr.mxu0 0.0
    %228 = vmatpush1.msra.mxu0 0.0
    %229 = vmatprep.subr.mxu0 0.0
    %230 = vmatpush1.msra.mxu0 0.0
    %231 = vmatprep.subr.mxu0 0.0
    %232 = vmatpush1.msra.mxu0 0.0
    %233 = vmatprep.subr.mxu0 0.0
    %234 = vmatpush1.msra.mxu0 0.0
    %235 = vmatprep.subr.mxu0 0.0
    %236 = vmatpush1.msra.mxu0 0.0
    %237 = vmatprep.subr.mxu0 0.0
    %238 = vmatpush1.msra.mxu0 0.0
    %239 = vmatprep.subr.mxu0 0.0
    %240 = vmatpush1.msra.mxu0 0.0
    %241 = vmatprep.subr.mxu0 0.0
    %242 = vmatpush1.msra.mxu0 0.0
    %243 = vmatprep.subr.mxu0 0.0
    %244 = vmatpush1.msra.mxu0 0.0
    %245 = vmatprep.subr.mxu0 0.0
    %246 = vmatpush1.msra.mxu0 0.0
    %247 = vmatprep.subr.mxu0 0.0
    %248 = vmatpush1.msra.mxu0 0.0
    %249 = vmatprep.subr.mxu0 0.0
    %250 = vmatpush1.msra.mxu0 0.0
    %251 = vmatprep.subr.mxu0 0.0
    %252 = vmatpush1.msra.mxu0 0.0
    %253 = vmatprep.subr.mxu0 0.0
    %254 = vmatpush1.msra.mxu0 0.0
    %255 = vmatprep.subr.mxu0 0.0
    %256 = vmatpush1.msra.mxu0 0.0
    %257 = vmatprep.subr.mxu0 0.0
    %258 = vmatpush1.msra.mxu0 0.0
    %259 = vmatprep.subr.mxu0 0.0
    %260 = vmatpush1.msra.mxu0 0.0
    %261 = vmatprep.subr.mxu0 0.0
    %262 = vmatpush1.msra.mxu0 0.0
    %263 = vmatprep.subr.mxu0 0.0
    %264 = vmatpush1.msra.mxu0 0.0
    %265 = vmatprep.subr.mxu0 0.0
    %266 = vmatpush1.msra.mxu0 0.0
    %267 = vmatprep.subr.mxu0 0.0
    %268 = vmatpush1.msra.mxu0 0.0
    %269 = vmatprep.mubr.f32.mxu0 0.0
    %270 = vmatmul.mubr.f32.gmra.mrb[0].mxu0 %v203
    %v271 = vpop.f32.mrb[0].mxu0
    %v272 = vadd.f32 0.0, %v271
    %v273 = vpop.f32.mrb[0].mxu0
    %274 = vdwg.mxu0
    %275 = vset.pattern.permute.xlu0 2
    %276 = vperm.xlu0 %275, %v105
    %v277 = vpop.permute.xlu0 %276
    %vm278 = vcmp.eq.s32.totalorder %v107, %v277
    %v279 = vsel %vm278, 1, 0
    %v280 = vcvt.s32.f32 %v279
    %v281 = vld [vmem:[%s6] sm:$0xff]
    %v283 = vsel %vm201, %v280, 0
    %285 = vmatprep.subr.mxu0 0.0
    %286 = vmatpush1.msra.mxu0 %v281
    %287 = vmatprep.subr.mxu0 0.0
    %288 = vmatpush1.msra.mxu0 0.0
    %289 = vmatprep.subr.mxu0 0.0
    %290 = vmatpush1.msra.mxu0 0.0
    %291 = vmatprep.subr.mxu0 0.0
    %292 = vmatpush1.msra.mxu0 0.0
    %293 = vmatprep.subr.mxu0 0.0
    %294 = vmatpush1.msra.mxu0 0.0
    %295 = vmatprep.subr.mxu0 0.0
    %296 = vmatpush1.msra.mxu0 0.0
    %297 = vmatprep.subr.mxu0 0.0
    %298 = vmatpush1.msra.mxu0 0.0
    %299 = vmatprep.subr.mxu0 0.0
    %300 = vmatpush1.msra.mxu0 0.0
    %301 = vmatprep.subr.mxu0 0.0
    %302 = vmatpush1.msra.mxu0 0.0
    %303 = vmatprep.subr.mxu0 0.0
    %304 = vmatpush1.msra.mxu0 0.0
    %305 = vmatprep.subr.mxu0 0.0
    %306 = vmatpush1.msra.mxu0 0.0
    %307 = vmatprep.subr.mxu0 0.0
    %308 = vmatpush1.msra.mxu0 0.0
    %309 = vmatprep.subr.mxu0 0.0
    %310 = vmatpush1.msra.mxu0 0.0
    %311 = vmatprep.subr.mxu0 0.0
    %312 = vmatpush1.msra.mxu0 0.0
    %313 = vmatprep.subr.mxu0 0.0
    %314 = vmatpush1.msra.mxu0 0.0
    %315 = vmatprep.subr.mxu0 0.0
    %316 = vmatpush1.msra.mxu0 0.0
    %317 = vmatprep.subr.mxu0 0.0
    %318 = vmatpush1.msra.mxu0 0.0
    %319 = vmatprep.subr.mxu0 0.0
    %320 = vmatpush1.msra.mxu0 0.0
    %321 = vmatprep.subr.mxu0 0.0
    %322 = vmatpush1.msra.mxu0 0.0
    %323 = vmatprep.subr.mxu0 0.0
    %324 = vmatpush1.msra.mxu0 0.0
    %325 = vmatprep.subr.mxu0 0.0
    %326 = vmatpush1.msra.mxu0 0.0
    %327 = vmatprep.subr.mxu0 0.0
    %328 = vmatpush1.msra.mxu0 0.0
    %329 = vmatprep.subr.mxu0 0.0
    %330 = vmatpush1.msra.mxu0 0.0
    %331 = vmatprep.subr.mxu0 0.0
    %332 = vmatpush1.msra.mxu0 0.0
    %333 = vmatprep.subr.mxu0 0.0
    %334 = vmatpush1.msra.mxu0 0.0
    %335 = vmatprep.subr.mxu0 0.0
    %336 = vmatpush1.msra.mxu0 0.0
    %337 = vmatprep.subr.mxu0 0.0
    %338 = vmatpush1.msra.mxu0 0.0
    %339 = vmatprep.subr.mxu0 0.0
    %340 = vmatpush1.msra.mxu0 0.0
    %341 = vmatprep.subr.mxu0 0.0
    %342 = vmatpush1.msra.mxu0 0.0
    %343 = vmatprep.subr.mxu0 0.0
    %344 = vmatpush1.msra.mxu0 0.0
    %345 = vmatprep.subr.mxu0 0.0
    %346 = vmatpush1.msra.mxu0 0.0
    %347 = vmatprep.subr.mxu0 0.0
    %348 = vmatpush1.msra.mxu0 0.0
    %349 = vmatprep.mubr.f32.mxu0 0.0
    %350 = vmatmul.mubr.f32.gmra.mrb[0].mxu0 %v283
    %v351 = vpop.f32.mrb[0].mxu0
    %v352 = vadd.f32 0.0, %v351
    %v353 = vpop.f32.mrb[0].mxu0
    %354 = vdwg.mxu0
    %v355 = vld [vmem:[#allocation2] sm:$0xff]
    %v356 = vadd.f32 %v355, %v191
    %v357 = vadd.f32 %v356, %v272
    %v358 = vadd.f32 %v357, %v352
    %v359 = vld [vmem:[%s8] sm:$0x1]
    %v361 = vlaneseq
    %v362 = vshrl.u32 %v361, 7
    %v363 = vsub.s32 0, %v362
    %v364 = vrot.slane %v359, %v363
    %v366 = vadd.f32 %v358, %v364
    %v367 = vld [vmem:[%s2] sm:$0xff]
    %v368 = vld [vmem:[%s7] sm:$0x1]
    %370 = vset.pattern.permute.xlu0 0
    %371 = vperm.xlu0 %370, %v367
    %v372 = vpop.permute.xlu0 %371
    %v375 = vlaneseq
    %v376 = vshrl.u32 %v375, 7
    %v377 = vsub.s32 0, %v376
    %v378 = vrot.slane %v368, %v377
    %v380 = vmul.f32 %v372, %v378
    %v381 = vadd.f32 %v366, %v380
    %v382 = vld [vmem:[%s9] sm:$0xff]
    %v383 = vld [vmem:[%s9 + $0x8] sm:$0xff]
    %v384 = vld [vmem:[%s9 + $0x10] sm:$0xff]
    %v385 = vld [vmem:[%s9 + $0x18] sm:$0xff]
    %vm386 = vcmask 261120
    %v388 = vsel %vm386, 0.0, 0
    %390 = vmatprep.subr.mxu0 0.0
    %391 = vmatpush1.msra.mxu0 %v382
    %392 = vmatprep.subr.mxu0 0.0
    %393 = vmatpush1.msra.mxu0 %v383
    %394 = vmatprep.subr.mxu0 0.0
    %395 = vmatpush1.msra.mxu0 %v384
    %396 = vmatprep.subr.mxu0 0.0
    %397 = vmatpush1.msra.mxu0 %v385
    %398 = vmatprep.subr.mxu0 0.0
    %399 = vmatpush1.msra.mxu0 0.0
    %400 = vmatprep.subr.mxu0 0.0
    %401 = vmatpush1.msra.mxu0 0.0
    %402 = vmatprep.subr.mxu0 0.0
    %403 = vmatpush1.msra.mxu0 0.0
    %404 = vmatprep.subr.mxu0 0.0
    %405 = vmatpush1.msra.mxu0 0.0
    %406 = vmatprep.subr.mxu0 0.0
    %407 = vmatpush1.msra.mxu0 0.0
    %408 = vmatprep.subr.mxu0 0.0
    %409 = vmatpush1.msra.mxu0 0.0
    %410 = vmatprep.subr.mxu0 0.0
    %411 = vmatpush1.msra.mxu0 0.0
    %412 = vmatprep.subr.mxu0 0.0
    %413 = vmatpush1.msra.mxu0 0.0
    %414 = vmatprep.subr.mxu0 0.0
    %415 = vmatpush1.msra.mxu0 0.0
    %416 = vmatprep.subr.mxu0 0.0
    %417 = vmatpush1.msra.mxu0 0.0
    %418 = vmatprep.subr.mxu0 0.0
    %419 = vmatpush1.msra.mxu0 0.0
    %420 = vmatprep.subr.mxu0 0.0
    %421 = vmatpush1.msra.mxu0 0.0
    %422 = vmatprep.subr.mxu0 0.0
    %423 = vmatpush1.msra.mxu0 0.0
    %424 = vmatprep.subr.mxu0 0.0
    %425 = vmatpush1.msra.mxu0 0.0
    %426 = vmatprep.subr.mxu0 0.0
    %427 = vmatpush1.msra.mxu0 0.0
    %428 = vmatprep.subr.mxu0 0.0
    %429 = vmatpush1.msra.mxu0 0.0
    %430 = vmatprep.subr.mxu0 0.0
    %431 = vmatpush1.msra.mxu0 0.0
    %432 = vmatprep.subr.mxu0 0.0
    %433 = vmatpush1.msra.mxu0 0.0
    %434 = vmatprep.subr.mxu0 0.0
    %435 = vmatpush1.msra.mxu0 0.0
    %436 = vmatprep.subr.mxu0 0.0
    %437 = vmatpush1.msra.mxu0 0.0
    %438 = vmatprep.subr.mxu0 0.0
    %439 = vmatpush1.msra.mxu0 0.0
    %440 = vmatprep.subr.mxu0 0.0
    %441 = vmatpush1.msra.mxu0 0.0
    %442 = vmatprep.subr.mxu0 0.0
    %443 = vmatpush1.msra.mxu0 0.0
    %444 = vmatprep.subr.mxu0 0.0
    %445 = vmatpush1.msra.mxu0 0.0
    %446 = vmatprep.subr.mxu0 0.0
    %447 = vmatpush1.msra.mxu0 0.0
    %448 = vmatprep.subr.mxu0 0.0
    %449 = vmatpush1.msra.mxu0 0.0
    %450 = vmatprep.subr.mxu0 0.0
    %451 = vmatpush1.msra.mxu0 0.0
    %452 = vmatprep.subr.mxu0 0.0
    %453 = vmatpush1.msra.mxu0 0.0
    %454 = vmatprep.mubr.f32.mxu0 0.0
    %455 = vmatmul.mubr.f32.gmra.mrb[0].mxu0 %v388
    %v456 = vpop.f32.mrb[0].mxu0
    %v457 = vadd.f32 0.0, %v456
    %v458 = vpop.f32.mrb[0].mxu0
    %459 = vdwg.mxu0
    %v460 = vadd.f32 %v381, %v457
    %v461 = vxor.u32 %v460, 2147483648
    %v462 = vmul.f32 %v461, 1.442695
    %v463 = vpow.pop %v462
    %v464 = vadd.f32 %v463, 1.0
    %v465 = vrcp.pop %v464
    %v466 = vmul.f32 1.0, %v465
    %v467 = vtanh.pop %v460
    %v468 = vmul.f32 %v466, 0.0
    %470 = vrot.lane.b32.xlu0 %v467, 64
    %v471 = vpop.permute.xlu0 %470
    %v473 = vmul.f32 %v466, %v471
    %475 = vrot.lane.b32.xlu0 %v473, 32
    %v476 = vpop.permute.xlu0 %475
    %v478 = vadd.f32 %v468, %v476
    %v479 = vtanh.pop %v478
    %481 = vrot.lane.b32.xlu0 %v479, 64
    %v482 = vpop.permute.xlu0 %481
    %v484 = vmul.f32 %v466, %v482
    %486 = vrot.lane.b32.xlu0 %v484, 32
    %v487 = vpop.permute.xlu0 %486
    %v488 = vsel %vm386, %v487, 0
    %490 = vmatprep.subr.mxu0 0.0
    %491 = vmatpush1.msra.mxu0 %v382
    %492 = vmatprep.subr.mxu0 0.0
    %493 = vmatpush1.msra.mxu0 %v383
    %494 = vmatprep.subr.mxu0 0.0
    %495 = vmatpush1.msra.mxu0 %v384
    %496 = vmatprep.subr.mxu0 0.0
    %497 = vmatpush1.msra.mxu0 %v385
    %498 = vmatprep.subr.mxu0 0.0
    %499 = vmatpush1.msra.mxu0 0.0
    %500 = vmatprep.subr.mxu0 0.0
    %501 = vmatpush1.msra.mxu0 0.0
    %502 = vmatprep.subr.mxu0 0.0
    %503 = vmatpush1.msra.mxu0 0.0
    %504 = vmatprep.subr.mxu0 0.0
    %505 = vmatpush1.msra.mxu0 0.0
    %506 = vmatprep.subr.mxu0 0.0
    %507 = vmatpush1.msra.mxu0 0.0
    %508 = vmatprep.subr.mxu0 0.0
    %509 = vmatpush1.msra.mxu0 0.0
    %510 = vmatprep.subr.mxu0 0.0
    %511 = vmatpush1.msra.mxu0 0.0
    %512 = vmatprep.subr.mxu0 0.0
    %513 = vmatpush1.msra.mxu0 0.0
    %514 = vmatprep.subr.mxu0 0.0
    %515 = vmatpush1.msra.mxu0 0.0
    %516 = vmatprep.subr.mxu0 0.0
    %517 = vmatpush1.msra.mxu0 0.0
    %518 = vmatprep.subr.mxu0 0.0
    %519 = vmatpush1.msra.mxu0 0.0
    %520 = vmatprep.subr.mxu0 0.0
    %521 = vmatpush1.msra.mxu0 0.0
    %522 = vmatprep.subr.mxu0 0.0
    %523 = vmatpush1.msra.mxu0 0.0
    %524 = vmatprep.subr.mxu0 0.0
    %525 = vmatpush1.msra.mxu0 0.0
    %526 = vmatprep.subr.mxu0 0.0
    %527 = vmatpush1.msra.mxu0 0.0
    %528 = vmatprep.subr.mxu0 0.0
    %529 = vmatpush1.msra.mxu0 0.0
    %530 = vmatprep.subr.mxu0 0.0
    %531 = vmatpush1.msra.mxu0 0.0
    %532 = vmatprep.subr.mxu0 0.0
    %533 = vmatpush1.msra.mxu0 0.0
    %534 = vmatprep.subr.mxu0 0.0
    %535 = vmatpush1.msra.mxu0 0.0
    %536 = vmatprep.subr.mxu0 0.0
    %537 = vmatpush1.msra.mxu0 0.0
    %538 = vmatprep.subr.mxu0 0.0
    %539 = vmatpush1.msra.mxu0 0.0
    %540 = vmatprep.subr.mxu0 0.0
    %541 = vmatpush1.msra.mxu0 0.0
    %542 = vmatprep.subr.mxu0 0.0
    %543 = vmatpush1.msra.mxu0 0.0
    %544 = vmatprep.subr.mxu0 0.0
    %545 = vmatpush1.msra.mxu0 0.0
    %546 = vmatprep.subr.mxu0 0.0
    %547 = vmatpush1.msra.mxu0 0.0
    %548 = vmatprep.subr.mxu0 0.0
    %549 = vmatpush1.msra.mxu0 0.0
    %550 = vmatprep.subr.mxu0 0.0
    %551 = vmatpush1.msra.mxu0 0.0
    %552 = vmatprep.subr.mxu0 0.0
    %553 = vmatpush1.msra.mxu0 0.0
    %554 = vmatprep.mubr.f32.mxu0 0.0
    %555 = vmatmul.mubr.f32.gmra.mrb[0].mxu0 %v488
    %v556 = vpop.f32.mrb[0].mxu0
    %v557 = vadd.f32 0.0, %v556
    %v558 = vpop.f32.mrb[0].mxu0
    %559 = vdwg.mxu0
    %v561 = vrot.slane %v557, 7
    %v563 = vadd.f32 %v381, %v561
    %v564 = vxor.u32 %v563, 2147483648
    %v565 = vmul.f32 %v564, 1.442695
    %v566 = vpow.pop %v565
    %v567 = vadd.f32 %v566, 1.0
    %v568 = vrcp.pop %v567
    %v569 = vmul.f32 1.0, %v568
    %v570 = vtanh.pop %v563
    %v572 = vrot.slane %v478, 7
    %v574 = vmul.f32 %v569, %v572
    %576 = vrot.lane.b32.xlu0 %v570, 64
    %v577 = vpop.permute.xlu0 %576
    %v579 = vmul.f32 %v569, %v577
    %581 = vrot.lane.b32.xlu0 %v579, 32
    %v582 = vpop.permute.xlu0 %581
    %v584 = vadd.f32 %v574, %v582
    %v585 = vtanh.pop %v584
    %587 = vrot.lane.b32.xlu0 %v585, 64
    %v588 = vpop.permute.xlu0 %587
    %v590 = vmul.f32 %v569, %v588
    %v592 = vrot.slane %v590, 1
    %593 = vrot.lane.b32.xlu0 %v592, 32
    %v594 = vpop.permute.xlu0 %593
    %v595 = vsel %vm386, %v594, 0
    %597 = vmatprep.subr.mxu0 0.0
    %598 = vmatpush1.msra.mxu0 %v382
    %599 = vmatprep.subr.mxu0 0.0
    %600 = vmatpush1.msra.mxu0 %v383
    %601 = vmatprep.subr.mxu0 0.0
    %602 = vmatpush1.msra.mxu0 %v384
    %603 = vmatprep.subr.mxu0 0.0
    %604 = vmatpush1.msra.mxu0 %v385
    %605 = vmatprep.subr.mxu0 0.0
    %606 = vmatpush1.msra.mxu0 0.0
    %607 = vmatprep.subr.mxu0 0.0
    %608 = vmatpush1.msra.mxu0 0.0
    %609 = vmatprep.subr.mxu0 0.0
    %610 = vmatpush1.msra.mxu0 0.0
    %611 = vmatprep.subr.mxu0 0.0
    %612 = vmatpush1.msra.mxu0 0.0
    %613 = vmatprep.subr.mxu0 0.0
    %614 = vmatpush1.msra.mxu0 0.0
    %615 = vmatprep.subr.mxu0 0.0
    %616 = vmatpush1.msra.mxu0 0.0
    %617 = vmatprep.subr.mxu0 0.0
    %618 = vmatpush1.msra.mxu0 0.0
    %619 = vmatprep.subr.mxu0 0.0
    %620 = vmatpush1.msra.mxu0 0.0
    %621 = vmatprep.subr.mxu0 0.0
    %622 = vmatpush1.msra.mxu0 0.0
    %623 = vmatprep.subr.mxu0 0.0
    %624 = vmatpush1.msra.mxu0 0.0
    %625 = vmatprep.subr.mxu0 0.0
    %626 = vmatpush1.msra.mxu0 0.0
    %627 = vmatprep.subr.mxu0 0.0
    %628 = vmatpush1.msra.mxu0 0.0
    %629 = vmatprep.subr.mxu0 0.0
    %630 = vmatpush1.msra.mxu0 0.0
    %631 = vmatprep.subr.mxu0 0.0
    %632 = vmatpush1.msra.mxu0 0.0
    %633 = vmatprep.subr.mxu0 0.0
    %634 = vmatpush1.msra.mxu0 0.0
    %635 = vmatprep.subr.mxu0 0.0
    %636 = vmatpush1.msra.mxu0 0.0
    %637 = vmatprep.subr.mxu0 0.0
    %638 = vmatpush1.msra.mxu0 0.0
    %639 = vmatprep.subr.mxu0 0.0
    %640 = vmatpush1.msra.mxu0 0.0
    %641 = vmatprep.subr.mxu0 0.0
    %642 = vmatpush1.msra.mxu0 0.0
    %643 = vmatprep.subr.mxu0 0.0
    %644 = vmatpush1.msra.mxu0 0.0
    %645 = vmatprep.subr.mxu0 0.0
    %646 = vmatpush1.msra.mxu0 0.0
    %647 = vmatprep.subr.mxu0 0.0
    %648 = vmatpush1.msra.mxu0 0.0
    %649 = vmatprep.subr.mxu0 0.0
    %650 = vmatpush1.msra.mxu0 0.0
    %651 = vmatprep.subr.mxu0 0.0
    %652 = vmatpush1.msra.mxu0 0.0
    %653 = vmatprep.subr.mxu0 0.0
    %654 = vmatpush1.msra.mxu0 0.0
    %655 = vmatprep.subr.mxu0 0.0
    %656 = vmatpush1.msra.mxu0 0.0
    %657 = vmatprep.subr.mxu0 0.0
    %658 = vmatpush1.msra.mxu0 0.0
    %659 = vmatprep.subr.mxu0 0.0
    %660 = vmatpush1.msra.mxu0 0.0
    %661 = vmatprep.mubr.f32.mxu0 0.0
    %662 = vmatmul.mubr.f32.gmra.mrb[0].mxu0 %v595
    %v663 = vpop.f32.mrb[0].mxu0
    %v664 = vadd.f32 0.0, %v663
    %v665 = vpop.f32.mrb[0].mxu0
    %666 = vdwg.mxu0
    %v668 = vrot.slane %v664, 6
    %v670 = vadd.f32 %v381, %v668
    %v671 = vxor.u32 %v670, 2147483648
    %v672 = vmul.f32 %v671, 1.442695
    %v673 = vpow.pop %v672
    %v674 = vadd.f32 %v673, 1.0
    %v675 = vrcp.pop %v674
    %v676 = vmul.f32 1.0, %v675
    %v677 = vtanh.pop %v670
    %v679 = vrot.slane %v584, 7
    %v681 = vmul.f32 %v676, %v679
    %683 = vrot.lane.b32.xlu0 %v677, 64
    %v684 = vpop.permute.xlu0 %683
    %v686 = vmul.f32 %v676, %v684
    %688 = vrot.lane.b32.xlu0 %v686, 32
    %v689 = vpop.permute.xlu0 %688
    %v691 = vadd.f32 %v681, %v689
    %v692 = vtanh.pop %v691
    %694 = vrot.lane.b32.xlu0 %v692, 64
    %v695 = vpop.permute.xlu0 %694
    %v697 = vmul.f32 %v676, %v695
    %v699 = vrot.slane %v697, 2
    %700 = vrot.lane.b32.xlu0 %v699, 32
    %v701 = vpop.permute.xlu0 %700
    %v702 = vsel %vm386, %v701, 0
    %704 = vmatprep.subr.mxu0 0.0
    %705 = vmatpush1.msra.mxu0 %v382
    %706 = vmatprep.subr.mxu0 0.0
    %707 = vmatpush1.msra.mxu0 %v383
    %708 = vmatprep.subr.mxu0 0.0
    %709 = vmatpush1.msra.mxu0 %v384
    %710 = vmatprep.subr.mxu0 0.0
    %711 = vmatpush1.msra.mxu0 %v385
    %712 = vmatprep.subr.mxu0 0.0
    %713 = vmatpush1.msra.mxu0 0.0
    %714 = vmatprep.subr.mxu0 0.0
    %715 = vmatpush1.msra.mxu0 0.0
    %716 = vmatprep.subr.mxu0 0.0
    %717 = vmatpush1.msra.mxu0 0.0
    %718 = vmatprep.subr.mxu0 0.0
    %719 = vmatpush1.msra.mxu0 0.0
    %720 = vmatprep.subr.mxu0 0.0
    %721 = vmatpush1.msra.mxu0 0.0
    %722 = vmatprep.subr.mxu0 0.0
    %723 = vmatpush1.msra.mxu0 0.0
    %724 = vmatprep.subr.mxu0 0.0
    %725 = vmatpush1.msra.mxu0 0.0
    %726 = vmatprep.subr.mxu0 0.0
    %727 = vmatpush1.msra.mxu0 0.0
    %728 = vmatprep.subr.mxu0 0.0
    %729 = vmatpush1.msra.mxu0 0.0
    %730 = vmatprep.subr.mxu0 0.0
    %731 = vmatpush1.msra.mxu0 0.0
    %732 = vmatprep.subr.mxu0 0.0
    %733 = vmatpush1.msra.mxu0 0.0
    %734 = vmatprep.subr.mxu0 0.0
    %735 = vmatpush1.msra.mxu0 0.0
    %736 = vmatprep.subr.mxu0 0.0
    %737 = vmatpush1.msra.mxu0 0.0
    %738 = vmatprep.subr.mxu0 0.0
    %739 = vmatpush1.msra.mxu0 0.0
    %740 = vmatprep.subr.mxu0 0.0
    %741 = vmatpush1.msra.mxu0 0.0
    %742 = vmatprep.subr.mxu0 0.0
    %743 = vmatpush1.msra.mxu0 0.0
    %744 = vmatprep.subr.mxu0 0.0
    %745 = vmatpush1.msra.mxu0 0.0
    %746 = vmatprep.subr.mxu0 0.0
    %747 = vmatpush1.msra.mxu0 0.0
    %748 = vmatprep.subr.mxu0 0.0
    %749 = vmatpush1.msra.mxu0 0.0
    %750 = vmatprep.subr.mxu0 0.0
    %751 = vmatpush1.msra.mxu0 0.0
    %752 = vmatprep.subr.mxu0 0.0
    %753 = vmatpush1.msra.mxu0 0.0
    %754 = vmatprep.subr.mxu0 0.0
    %755 = vmatpush1.msra.mxu0 0.0
    %756 = vmatprep.subr.mxu0 0.0
    %757 = vmatpush1.msra.mxu0 0.0
    %758 = vmatprep.subr.mxu0 0.0
    %759 = vmatpush1.msra.mxu0 0.0
    %760 = vmatprep.subr.mxu0 0.0
    %761 = vmatpush1.msra.mxu0 0.0
    %762 = vmatprep.subr.mxu0 0.0
    %763 = vmatpush1.msra.mxu0 0.0
    %764 = vmatprep.subr.mxu0 0.0
    %765 = vmatpush1.msra.mxu0 0.0
    %766 = vmatprep.subr.mxu0 0.0
    %767 = vmatpush1.msra.mxu0 0.0
    %768 = vmatprep.mubr.f32.mxu0 0.0
    %769 = vmatmul.mubr.f32.gmra.mrb[0].mxu0 %v702
    %v770 = vpop.f32.mrb[0].mxu0
    %v771 = vadd.f32 0.0, %v770
    %v772 = vpop.f32.mrb[0].mxu0
    %773 = vdwg.mxu0
    %v775 = vrot.slane %v771, 5
    %v777 = vadd.f32 %v381, %v775
    %v778 = vxor.u32 %v777, 2147483648
    %v779 = vmul.f32 %v778, 1.442695
    %v780 = vpow.pop %v779
    %v781 = vadd.f32 %v780, 1.0
    %v782 = vrcp.pop %v781
    %v783 = vmul.f32 1.0, %v782
    %v784 = vtanh.pop %v777
    %v786 = vrot.slane %v691, 7
    %v788 = vmul.f32 %v783, %v786
    %790 = vrot.lane.b32.xlu0 %v784, 64
    %v791 = vpop.permute.xlu0 %790
    %v793 = vmul.f32 %v783, %v791
    %795 = vrot.lane.b32.xlu0 %v793, 32
    %v796 = vpop.permute.xlu0 %795
    %v798 = vadd.f32 %v788, %v796
    %v799 = vtanh.pop %v798
    %801 = vrot.lane.b32.xlu0 %v799, 64
    %v802 = vpop.permute.xlu0 %801
    %v804 = vmul.f32 %v783, %v802
    %v806 = vrot.slane %v804, 3
    %807 = vrot.lane.b32.xlu0 %v806, 32
    %v808 = vpop.permute.xlu0 %807
    %v809 = vsel %vm386, %v808, 0
    %811 = vmatprep.subr.mxu0 0.0
    %812 = vmatpush1.msra.mxu0 %v382
    %813 = vmatprep.subr.mxu0 0.0
    %814 = vmatpush1.msra.mxu0 %v383
    %815 = vmatprep.subr.mxu0 0.0
    %816 = vmatpush1.msra.mxu0 %v384
    %817 = vmatprep.subr.mxu0 0.0
    %818 = vmatpush1.msra.mxu0 %v385
    %819 = vmatprep.subr.mxu0 0.0
    %820 = vmatpush1.msra.mxu0 0.0
    %821 = vmatprep.subr.mxu0 0.0
    %822 = vmatpush1.msra.mxu0 0.0
    %823 = vmatprep.subr.mxu0 0.0
    %824 = vmatpush1.msra.mxu0 0.0
    %825 = vmatprep.subr.mxu0 0.0
    %826 = vmatpush1.msra.mxu0 0.0
    %827 = vmatprep.subr.mxu0 0.0
    %828 = vmatpush1.msra.mxu0 0.0
    %829 = vmatprep.subr.mxu0 0.0
    %830 = vmatpush1.msra.mxu0 0.0
    %831 = vmatprep.subr.mxu0 0.0
    %832 = vmatpush1.msra.mxu0 0.0
    %833 = vmatprep.subr.mxu0 0.0
    %834 = vmatpush1.msra.mxu0 0.0
    %835 = vmatprep.subr.mxu0 0.0
    %836 = vmatpush1.msra.mxu0 0.0
    %837 = vmatprep.subr.mxu0 0.0
    %838 = vmatpush1.msra.mxu0 0.0
    %839 = vmatprep.subr.mxu0 0.0
    %840 = vmatpush1.msra.mxu0 0.0
    %841 = vmatprep.subr.mxu0 0.0
    %842 = vmatpush1.msra.mxu0 0.0
    %843 = vmatprep.subr.mxu0 0.0
    %844 = vmatpush1.msra.mxu0 0.0
    %845 = vmatprep.subr.mxu0 0.0
    %846 = vmatpush1.msra.mxu0 0.0
    %847 = vmatprep.subr.mxu0 0.0
    %848 = vmatpush1.msra.mxu0 0.0
    %849 = vmatprep.subr.mxu0 0.0
    %850 = vmatpush1.msra.mxu0 0.0
    %851 = vmatprep.subr.mxu0 0.0
    %852 = vmatpush1.msra.mxu0 0.0
    %853 = vmatprep.subr.mxu0 0.0
    %854 = vmatpush1.msra.mxu0 0.0
    %855 = vmatprep.subr.mxu0 0.0
    %856 = vmatpush1.msra.mxu0 0.0
    %857 = vmatprep.subr.mxu0 0.0
    %858 = vmatpush1.msra.mxu0 0.0
    %859 = vmatprep.subr.mxu0 0.0
    %860 = vmatpush1.msra.mxu0 0.0
    %861 = vmatprep.subr.mxu0 0.0
    %862 = vmatpush1.msra.mxu0 0.0
    %863 = vmatprep.subr.mxu0 0.0
    %864 = vmatpush1.msra.mxu0 0.0
    %865 = vmatprep.subr.mxu0 0.0
    %866 = vmatpush1.msra.mxu0 0.0
    %867 = vmatprep.subr.mxu0 0.0
    %868 = vmatpush1.msra.mxu0 0.0
    %869 = vmatprep.subr.mxu0 0.0
    %870 = vmatpush1.msra.mxu0 0.0
    %871 = vmatprep.subr.mxu0 0.0
    %872 = vmatpush1.msra.mxu0 0.0
    %873 = vmatprep.subr.mxu0 0.0
    %874 = vmatpush1.msra.mxu0 0.0
    %875 = vmatprep.mubr.f32.mxu0 0.0
    %876 = vmatmul.mubr.f32.gmra.mrb[0].mxu0 %v809
    %v877 = vpop.f32.mrb[0].mxu0
    %v878 = vadd.f32 0.0, %v877
    %v879 = vpop.f32.mrb[0].mxu0
    %880 = vdwg.mxu0
    %v882 = vrot.slane %v878, 4
    %v884 = vadd.f32 %v381, %v882
    %v885 = vxor.u32 %v884, 2147483648
    %v886 = vmul.f32 %v885, 1.442695
    %v887 = vpow.pop %v886
    %v888 = vadd.f32 %v887, 1.0
    %v889 = vrcp.pop %v888
    %v890 = vmul.f32 1.0, %v889
    %v891 = vtanh.pop %v884
    %v893 = vrot.slane %v798, 7
    %v895 = vmul.f32 %v890, %v893
    %897 = vrot.lane.b32.xlu0 %v891, 64
    %v898 = vpop.permute.xlu0 %897
    %v900 = vmul.f32 %v890, %v898
    %902 = vrot.lane.b32.xlu0 %v900, 32
    %v903 = vpop.permute.xlu0 %902
    %v905 = vadd.f32 %v895, %v903
    %v906 = vtanh.pop %v905
    %908 = vrot.lane.b32.xlu0 %v906, 64
    %v909 = vpop.permute.xlu0 %908
    %v911 = vmul.f32 %v890, %v909
    %v913 = vrot.slane %v911, 4
    %914 = vrot.lane.b32.xlu0 %v913, 32
    %v915 = vpop.permute.xlu0 %914
    %v916 = vsel %vm386, %v915, 0
    %918 = vmatprep.subr.mxu0 0.0
    %919 = vmatpush1.msra.mxu0 %v382
    %920 = vmatprep.subr.mxu0 0.0
    %921 = vmatpush1.msra.mxu0 %v383
    %922 = vmatprep.subr.mxu0 0.0
    %923 = vmatpush1.msra.mxu0 %v384
    %924 = vmatprep.subr.mxu0 0.0
    %925 = vmatpush1.msra.mxu0 %v385
    %926 = vmatprep.subr.mxu0 0.0
    %927 = vmatpush1.msra.mxu0 0.0
    %928 = vmatprep.subr.mxu0 0.0
    %929 = vmatpush1.msra.mxu0 0.0
    %930 = vmatprep.subr.mxu0 0.0
    %931 = vmatpush1.msra.mxu0 0.0
    %932 = vmatprep.subr.mxu0 0.0
    %933 = vmatpush1.msra.mxu0 0.0
    %934 = vmatprep.subr.mxu0 0.0
    %935 = vmatpush1.msra.mxu0 0.0
    %936 = vmatprep.subr.mxu0 0.0
    %937 = vmatpush1.msra.mxu0 0.0
    %938 = vmatprep.subr.mxu0 0.0
    %939 = vmatpush1.msra.mxu0 0.0
    %940 = vmatprep.subr.mxu0 0.0
    %941 = vmatpush1.msra.mxu0 0.0
    %942 = vmatprep.subr.mxu0 0.0
    %943 = vmatpush1.msra.mxu0 0.0
    %944 = vmatprep.subr.mxu0 0.0
    %945 = vmatpush1.msra.mxu0 0.0
    %946 = vmatprep.subr.mxu0 0.0
    %947 = vmatpush1.msra.mxu0 0.0
    %948 = vmatprep.subr.mxu0 0.0
    %949 = vmatpush1.msra.mxu0 0.0
    %950 = vmatprep.subr.mxu0 0.0
    %951 = vmatpush1.msra.mxu0 0.0
    %952 = vmatprep.subr.mxu0 0.0
    %953 = vmatpush1.msra.mxu0 0.0
    %954 = vmatprep.subr.mxu0 0.0
    %955 = vmatpush1.msra.mxu0 0.0
    %956 = vmatprep.subr.mxu0 0.0
    %957 = vmatpush1.msra.mxu0 0.0
    %958 = vmatprep.subr.mxu0 0.0
    %959 = vmatpush1.msra.mxu0 0.0
    %960 = vmatprep.subr.mxu0 0.0
    %961 = vmatpush1.msra.mxu0 0.0
    %962 = vmatprep.subr.mxu0 0.0
    %963 = vmatpush1.msra.mxu0 0.0
    %964 = vmatprep.subr.mxu0 0.0
    %965 = vmatpush1.msra.mxu0 0.0
    %966 = vmatprep.subr.mxu0 0.0
    %967 = vmatpush1.msra.mxu0 0.0
    %968 = vmatprep.subr.mxu0 0.0
    %969 = vmatpush1.msra.mxu0 0.0
    %970 = vmatprep.subr.mxu0 0.0
    %971 = vmatpush1.msra.mxu0 0.0
    %972 = vmatprep.subr.mxu0 0.0
    %973 = vmatpush1.msra.mxu0 0.0
    %974 = vmatprep.subr.mxu0 0.0
    %975 = vmatpush1.msra.mxu0 0.0
    %976 = vmatprep.subr.mxu0 0.0
    %977 = vmatpush1.msra.mxu0 0.0
    %978 = vmatprep.subr.mxu0 0.0
    %979 = vmatpush1.msra.mxu0 0.0
    %980 = vmatprep.subr.mxu0 0.0
    %981 = vmatpush1.msra.mxu0 0.0
    %982 = vmatprep.mubr.f32.mxu0 0.0
    %983 = vmatmul.mubr.f32.gmra.mrb[0].mxu0 %v916
    %v984 = vpop.f32.mrb[0].mxu0
    %v985 = vadd.f32 0.0, %v984
    %v986 = vpop.f32.mrb[0].mxu0
    %987 = vdwg.mxu0
    %v989 = vrot.slane %v985, 3
    %v991 = vadd.f32 %v381, %v989
    %v992 = vxor.u32 %v991, 2147483648
    %v993 = vmul.f32 %v992, 1.442695
    %v994 = vpow.pop %v993
    %v995 = vadd.f32 %v994, 1.0
    %v996 = vrcp.pop %v995
    %v997 = vmul.f32 1.0, %v996
    %v998 = vtanh.pop %v991
    %v1000 = vrot.slane %v905, 7
    %v1002 = vmul.f32 %v997, %v1000
    %1004 = vrot.lane.b32.xlu0 %v998, 64
    %v1005 = vpop.permute.xlu0 %1004
    %v1007 = vmul.f32 %v997, %v1005
    %1009 = vrot.lane.b32.xlu0 %v1007, 32
    %v1010 = vpop.permute.xlu0 %1009
    %v1012 = vadd.f32 %v1002, %v1010
    %v1013 = vtanh.pop %v1012
    %1015 = vrot.lane.b32.xlu0 %v1013, 64
    %v1016 = vpop.permute.xlu0 %1015
    %v1018 = vmul.f32 %v997, %v1016
    %v1020 = vrot.slane %v1018, 5
    %1021 = vrot.lane.b32.xlu0 %v1020, 32
    %v1022 = vpop.permute.xlu0 %1021
    %v1023 = vsel %vm386, %v1022, 0
    %1025 = vmatprep.subr.mxu0 0.0
    %1026 = vmatpush1.msra.mxu0 %v382
    %1027 = vmatprep.subr.mxu0 0.0
    %1028 = vmatpush1.msra.mxu0 %v383
    %1029 = vmatprep.subr.mxu0 0.0
    %1030 = vmatpush1.msra.mxu0 %v384
    %1031 = vmatprep.subr.mxu0 0.0
    %1032 = vmatpush1.msra.mxu0 %v385
    %1033 = vmatprep.subr.mxu0 0.0
    %1034 = vmatpush1.msra.mxu0 0.0
    %1035 = vmatprep.subr.mxu0 0.0
    %1036 = vmatpush1.msra.mxu0 0.0
    %1037 = vmatprep.subr.mxu0 0.0
    %1038 = vmatpush1.msra.mxu0 0.0
    %1039 = vmatprep.subr.mxu0 0.0
    %1040 = vmatpush1.msra.mxu0 0.0
    %1041 = vmatprep.subr.mxu0 0.0
    %1042 = vmatpush1.msra.mxu0 0.0
    %1043 = vmatprep.subr.mxu0 0.0
    %1044 = vmatpush1.msra.mxu0 0.0
    %1045 = vmatprep.subr.mxu0 0.0
    %1046 = vmatpush1.msra.mxu0 0.0
    %1047 = vmatprep.subr.mxu0 0.0
    %1048 = vmatpush1.msra.mxu0 0.0
    %1049 = vmatprep.subr.mxu0 0.0
    %1050 = vmatpush1.msra.mxu0 0.0
    %1051 = vmatprep.subr.mxu0 0.0
    %1052 = vmatpush1.msra.mxu0 0.0
    %1053 = vmatprep.subr.mxu0 0.0
    %1054 = vmatpush1.msra.mxu0 0.0
    %1055 = vmatprep.subr.mxu0 0.0
    %1056 = vmatpush1.msra.mxu0 0.0
    %1057 = vmatprep.subr.mxu0 0.0
    %1058 = vmatpush1.msra.mxu0 0.0
    %1059 = vmatprep.subr.mxu0 0.0
    %1060 = vmatpush1.msra.mxu0 0.0
    %1061 = vmatprep.subr.mxu0 0.0
    %1062 = vmatpush1.msra.mxu0 0.0
    %1063 = vmatprep.subr.mxu0 0.0
    %1064 = vmatpush1.msra.mxu0 0.0
    %1065 = vmatprep.subr.mxu0 0.0
    %1066 = vmatpush1.msra.mxu0 0.0
    %1067 = vmatprep.subr.mxu0 0.0
    %1068 = vmatpush1.msra.mxu0 0.0
    %1069 = vmatprep.subr.mxu0 0.0
    %1070 = vmatpush1.msra.mxu0 0.0
    %1071 = vmatprep.subr.mxu0 0.0
    %1072 = vmatpush1.msra.mxu0 0.0
    %1073 = vmatprep.subr.mxu0 0.0
    %1074 = vmatpush1.msra.mxu0 0.0
    %1075 = vmatprep.subr.mxu0 0.0
    %1076 = vmatpush1.msra.mxu0 0.0
    %1077 = vmatprep.subr.mxu0 0.0
    %1078 = vmatpush1.msra.mxu0 0.0
    %1079 = vmatprep.subr.mxu0 0.0
    %1080 = vmatpush1.msra.mxu0 0.0
    %1081 = vmatprep.subr.mxu0 0.0
    %1082 = vmatpush1.msra.mxu0 0.0
    %1083 = vmatprep.subr.mxu0 0.0
    %1084 = vmatpush1.msra.mxu0 0.0
    %1085 = vmatprep.subr.mxu0 0.0
    %1086 = vmatpush1.msra.mxu0 0.0
    %1087 = vmatprep.subr.mxu0 0.0
    %1088 = vmatpush1.msra.mxu0 0.0
    %1089 = vmatprep.mubr.f32.mxu0 0.0
    %1090 = vmatmul.mubr.f32.gmra.mrb[0].mxu0 %v1023
    %v1091 = vpop.f32.mrb[0].mxu0
    %v1092 = vadd.f32 0.0, %v1091
    %v1093 = vpop.f32.mrb[0].mxu0
    %1094 = vdwg.mxu0
    %v1096 = vrot.slane %v1092, 2
    %v1098 = vadd.f32 %v381, %v1096
    %v1099 = vxor.u32 %v1098, 2147483648
    %v1100 = vmul.f32 %v1099, 1.442695
    %v1101 = vpow.pop %v1100
    %v1102 = vadd.f32 %v1101, 1.0
    %v1103 = vrcp.pop %v1102
    %v1104 = vmul.f32 1.0, %v1103
    %v1105 = vtanh.pop %v1098
    %v1107 = vrot.slane %v1012, 7
    %v1109 = vmul.f32 %v1104, %v1107
    %1111 = vrot.lane.b32.xlu0 %v1105, 64
    %v1112 = vpop.permute.xlu0 %1111
    %v1114 = vmul.f32 %v1104, %v1112
    %1116 = vrot.lane.b32.xlu0 %v1114, 32
    %v1117 = vpop.permute.xlu0 %1116
    %v1119 = vadd.f32 %v1109, %v1117
    %v1120 = vtanh.pop %v1119
    %1122 = vrot.lane.b32.xlu0 %v1120, 64
    %v1123 = vpop.permute.xlu0 %1122
    %v1125 = vmul.f32 %v1104, %v1123
    %v1127 = vrot.slane %v1125, 6
    %1128 = vrot.lane.b32.xlu0 %v1127, 32
    %v1129 = vpop.permute.xlu0 %1128
    %v1130 = vsel %vm386, %v1129, 0
    %1132 = vmatprep.subr.mxu0 0.0
    %1133 = vmatpush1.msra.mxu0 %v382
    %1134 = vmatprep.subr.mxu0 0.0
    %1135 = vmatpush1.msra.mxu0 %v383
    %1136 = vmatprep.subr.mxu0 0.0
    %1137 = vmatpush1.msra.mxu0 %v384
    %1138 = vmatprep.subr.mxu0 0.0
    %1139 = vmatpush1.msra.mxu0 %v385
    %1140 = vmatprep.subr.mxu0 0.0
    %1141 = vmatpush1.msra.mxu0 0.0
    %1142 = vmatprep.subr.mxu0 0.0
    %1143 = vmatpush1.msra.mxu0 0.0
    %1144 = vmatprep.subr.mxu0 0.0
    %1145 = vmatpush1.msra.mxu0 0.0
    %1146 = vmatprep.subr.mxu0 0.0
    %1147 = vmatpush1.msra.mxu0 0.0
    %1148 = vmatprep.subr.mxu0 0.0
    %1149 = vmatpush1.msra.mxu0 0.0
    %1150 = vmatprep.subr.mxu0 0.0
    %1151 = vmatpush1.msra.mxu0 0.0
    %1152 = vmatprep.subr.mxu0 0.0
    %1153 = vmatpush1.msra.mxu0 0.0
    %1154 = vmatprep.subr.mxu0 0.0
    %1155 = vmatpush1.msra.mxu0 0.0
    %1156 = vmatprep.subr.mxu0 0.0
    %1157 = vmatpush1.msra.mxu0 0.0
    %1158 = vmatprep.subr.mxu0 0.0
    %1159 = vmatpush1.msra.mxu0 0.0
    %1160 = vmatprep.subr.mxu0 0.0
    %1161 = vmatpush1.msra.mxu0 0.0
    %1162 = vmatprep.subr.mxu0 0.0
    %1163 = vmatpush1.msra.mxu0 0.0
    %1164 = vmatprep.subr.mxu0 0.0
    %1165 = vmatpush1.msra.mxu0 0.0
    %1166 = vmatprep.subr.mxu0 0.0
    %1167 = vmatpush1.msra.mxu0 0.0
    %1168 = vmatprep.subr.mxu0 0.0
    %1169 = vmatpush1.msra.mxu0 0.0
    %1170 = vmatprep.subr.mxu0 0.0
    %1171 = vmatpush1.msra.mxu0 0.0
    %1172 = vmatprep.subr.mxu0 0.0
    %1173 = vmatpush1.msra.mxu0 0.0
    %1174 = vmatprep.subr.mxu0 0.0
    %1175 = vmatpush1.msra.mxu0 0.0
    %1176 = vmatprep.subr.mxu0 0.0
    %1177 = vmatpush1.msra.mxu0 0.0
    %1178 = vmatprep.subr.mxu0 0.0
    %1179 = vmatpush1.msra.mxu0 0.0
    %1180 = vmatprep.subr.mxu0 0.0
    %1181 = vmatpush1.msra.mxu0 0.0
    %1182 = vmatprep.subr.mxu0 0.0
    %1183 = vmatpush1.msra.mxu0 0.0
    %1184 = vmatprep.subr.mxu0 0.0
    %1185 = vmatpush1.msra.mxu0 0.0
    %1186 = vmatprep.subr.mxu0 0.0
    %1187 = vmatpush1.msra.mxu0 0.0
    %1188 = vmatprep.subr.mxu0 0.0
    %1189 = vmatpush1.msra.mxu0 0.0
    %1190 = vmatprep.subr.mxu0 0.0
    %1191 = vmatpush1.msra.mxu0 0.0
    %1192 = vmatprep.subr.mxu0 0.0
    %1193 = vmatpush1.msra.mxu0 0.0
    %1194 = vmatprep.subr.mxu0 0.0
    %1195 = vmatpush1.msra.mxu0 0.0
    %1196 = vmatprep.mubr.f32.mxu0 0.0
    %1197 = vmatmul.mubr.f32.gmra.mrb[0].mxu0 %v1130
    %v1198 = vpop.f32.mrb[0].mxu0
    %v1199 = vadd.f32 0.0, %v1198
    %v1200 = vpop.f32.mrb[0].mxu0
    %1201 = vdwg.mxu0
    %v1203 = vrot.slane %v1199, 1
    %v1205 = vadd.f32 %v381, %v1203
    %v1206 = vxor.u32 %v1205, 2147483648
    %v1207 = vmul.f32 %v1206, 1.442695
    %v1208 = vpow.pop %v1207
    %v1209 = vadd.f32 %v1208, 1.0
    %v1210 = vrcp.pop %v1209
    %v1211 = vmul.f32 1.0, %v1210
    %v1212 = vtanh.pop %v1205
    %v1214 = vrot.slane %v1119, 7
    %v1216 = vmul.f32 %v1211, %v1214
    %1218 = vrot.lane.b32.xlu0 %v1212, 64
    %v1219 = vpop.permute.xlu0 %1218
    %v1221 = vmul.f32 %v1211, %v1219
    %1223 = vrot.lane.b32.xlu0 %v1221, 32
    %v1224 = vpop.permute.xlu0 %1223
    %v1226 = vadd.f32 %v1216, %v1224
    %v1227 = vtanh.pop %v1226
    %1229 = vrot.lane.b32.xlu0 %v1227, 64
    %v1230 = vpop.permute.xlu0 %1229
    %v1232 = vmul.f32 %v1211, %v1230
    %vm1233 = vcmask 1040384
    %v1234 = vsel %vm1233, %v484, %v590
    %vm1235 = vcmask 1041408
    %v1236 = vsel %vm1235, %v1234, %v697
    %vm1237 = vcmask 1042432
    %v1238 = vsel %vm1237, %v1236, %v804
    %vm1239 = vcmask 1043456
    %v1240 = vsel %vm1239, %v1238, %v911
    %vm1241 = vcmask 1044480
    %v1242 = vsel %vm1241, %v1240, %v1018
    %vm1243 = vcmask 1045504
    %v1244 = vsel %vm1243, %v1242, %v1125
    %vm1245 = vcmask 1046528
    %v1246 = vsel %vm1245, %v1244, %v1232
    %v1247 = vmax.f32 %v1246, 0.0
    %v1248 = vld [vmem:[%s10] sm:$0xff]
    %v1249 = vld [vmem:[%s10 + $0x8] sm:$0xff]
    %v1250 = vld [vmem:[%s10 + $0x10] sm:$0xff]
    %v1251 = vld [vmem:[%s10 + $0x18] sm:$0xff]
    %v1252 = vld [vmem:[%s11] sm:$0x1]
    %v1254 = vlaneseq
    %v1255 = vshrl.u32 %v1254, 7
    %v1256 = vsub.s32 0, %v1255
    %v1257 = vrot.slane %v1252, %v1256
    %1260 = vrot.lane.b32.xlu0 %v1247, 32
    %v1261 = vpop.permute.xlu0 %1260
    %v1262 = vsel %vm386, %v1261, 0
    %1264 = vmatprep.subr.mxu0 0.0
    %1265 = vmatpush1.msra.mxu0 %v1248
    %1266 = vmatprep.subr.mxu0 0.0
    %1267 = vmatpush1.msra.mxu0 %v1249
    %1268 = vmatprep.subr.mxu0 0.0
    %1269 = vmatpush1.msra.mxu0 %v1250
    %1270 = vmatprep.subr.mxu0 0.0
    %1271 = vmatpush1.msra.mxu0 %v1251
    %1272 = vmatprep.subr.mxu0 0.0
    %1273 = vmatpush1.msra.mxu0 0.0
    %1274 = vmatprep.subr.mxu0 0.0
    %1275 = vmatpush1.msra.mxu0 0.0
    %1276 = vmatprep.subr.mxu0 0.0
    %1277 = vmatpush1.msra.mxu0 0.0
    %1278 = vmatprep.subr.mxu0 0.0
    %1279 = vmatpush1.msra.mxu0 0.0
    %1280 = vmatprep.subr.mxu0 0.0
    %1281 = vmatpush1.msra.mxu0 0.0
    %1282 = vmatprep.subr.mxu0 0.0
    %1283 = vmatpush1.msra.mxu0 0.0
    %1284 = vmatprep.subr.mxu0 0.0
    %1285 = vmatpush1.msra.mxu0 0.0
    %1286 = vmatprep.subr.mxu0 0.0
    %1287 = vmatpush1.msra.mxu0 0.0
    %1288 = vmatprep.subr.mxu0 0.0
    %1289 = vmatpush1.msra.mxu0 0.0
    %1290 = vmatprep.subr.mxu0 0.0
    %1291 = vmatpush1.msra.mxu0 0.0
    %1292 = vmatprep.subr.mxu0 0.0
    %1293 = vmatpush1.msra.mxu0 0.0
    %1294 = vmatprep.subr.mxu0 0.0
    %1295 = vmatpush1.msra.mxu0 0.0
    %1296 = vmatprep.subr.mxu0 0.0
    %1297 = vmatpush1.msra.mxu0 0.0
    %1298 = vmatprep.subr.mxu0 0.0
    %1299 = vmatpush1.msra.mxu0 0.0
    %1300 = vmatprep.subr.mxu0 0.0
    %1301 = vmatpush1.msra.mxu0 0.0
    %1302 = vmatprep.subr.mxu0 0.0
    %1303 = vmatpush1.msra.mxu0 0.0
    %1304 = vmatprep.subr.mxu0 0.0
    %1305 = vmatpush1.msra.mxu0 0.0
    %1306 = vmatprep.subr.mxu0 0.0
    %1307 = vmatpush1.msra.mxu0 0.0
    %1308 = vmatprep.subr.mxu0 0.0
    %1309 = vmatpush1.msra.mxu0 0.0
    %1310 = vmatprep.subr.mxu0 0.0
    %1311 = vmatpush1.msra.mxu0 0.0
    %1312 = vmatprep.subr.mxu0 0.0
    %1313 = vmatpush1.msra.mxu0 0.0
    %1314 = vmatprep.subr.mxu0 0.0
    %1315 = vmatpush1.msra.mxu0 0.0
    %1316 = vmatprep.subr.mxu0 0.0
    %1317 = vmatpush1.msra.mxu0 0.0
    %1318 = vmatprep.subr.mxu0 0.0
    %1319 = vmatpush1.msra.mxu0 0.0
    %1320 = vmatprep.subr.mxu0 0.0
    %1321 = vmatpush1.msra.mxu0 0.0
    %1322 = vmatprep.subr.mxu0 0.0
    %1323 = vmatpush1.msra.mxu0 0.0
    %1324 = vmatprep.subr.mxu0 0.0
    %1325 = vmatpush1.msra.mxu0 0.0
    %1326 = vmatprep.subr.mxu0 0.0
    %1327 = vmatpush1.msra.mxu0 0.0
    %1328 = vmatprep.mubr.f32.mxu0 0.0
    %1329 = vmatmul.mubr.f32.gmra.mrb[0].mxu0 %v1262
    %v1330 = vpop.f32.mrb[0].mxu0
    %v1331 = vadd.f32 %v1257, %v1330
    %v1332 = vpop.f32.mrb[0].mxu0
    %1333 = vdwg.mxu0
    %v1334 = vmax.f32 %v1331, 0.0
    %v1335 = vld [vmem:[%s12] sm:$0xff]
    %v1336 = vld [vmem:[%s12 + $0x8] sm:$0xff]
    %v1337 = vld [vmem:[%s12 + $0x10] sm:$0xff]
    %v1338 = vld [vmem:[%s12 + $0x18] sm:$0xff]
    %v1339 = vld [vmem:[%s12 + $0x20] sm:$0xff]
    %v1340 = vld [vmem:[%s12 + $0x28] sm:$0xff]
    %v1341 = vld [vmem:[%s12 + $0x30] sm:$0xff]
    %v1342 = vld [vmem:[%s12 + $0x38] sm:$0xff]
    %v1343 = vld [vmem:[%s12 + $0x40] sm:$0xff]
    %v1344 = vld [vmem:[%s12 + $0x48] sm:$0xff]
    %v1345 = vld [vmem:[%s12 + $0x50] sm:$0xff]
    %v1346 = vld [vmem:[%s12 + $0x58] sm:$0xff]
    %v1347 = vld [vmem:[%s12 + $0x60] sm:$0xff]
    %v1348 = vld [vmem:[%s12 + $0x68] sm:$0xff]
    %v1349 = vld [vmem:[%s12 + $0x70] sm:$0xff]
    %v1350 = vld [vmem:[%s12 + $0x78] sm:$0xff]
    %v1351 = vld [vmem:[%s13] sm:$0x1]
    %v1353 = vlaneseq
    %v1354 = vshrl.u32 %v1353, 7
    %v1355 = vsub.s32 0, %v1354
    %v1356 = vrot.slane %v1351, %v1355
    %1358 = vmatprep.subr.mxu0 0.0
    %1359 = vmatpush1.msra.mxu0 %v1335
    %1360 = vmatprep.subr.mxu0 0.0
    %1361 = vmatpush1.msra.mxu0 %v1336
    %1362 = vmatprep.subr.mxu0 0.0
    %1363 = vmatpush1.msra.mxu0 %v1337
    %1364 = vmatprep.subr.mxu0 0.0
    %1365 = vmatpush1.msra.mxu0 %v1338
    %1366 = vmatprep.subr.mxu0 0.0
    %1367 = vmatpush1.msra.mxu0 %v1339
    %1368 = vmatprep.subr.mxu0 0.0
    %1369 = vmatpush1.msra.mxu0 %v1340
    %1370 = vmatprep.subr.mxu0 0.0
    %1371 = vmatpush1.msra.mxu0 %v1341
    %1372 = vmatprep.subr.mxu0 0.0
    %1373 = vmatpush1.msra.mxu0 %v1342
    %1374 = vmatprep.subr.mxu0 0.0
    %1375 = vmatpush1.msra.mxu0 %v1343
    %1376 = vmatprep.subr.mxu0 0.0
    %1377 = vmatpush1.msra.mxu0 %v1344
    %1378 = vmatprep.subr.mxu0 0.0
    %1379 = vmatpush1.msra.mxu0 %v1345
    %1380 = vmatprep.subr.mxu0 0.0
    %1381 = vmatpush1.msra.mxu0 %v1346
    %1382 = vmatprep.subr.mxu0 0.0
    %1383 = vmatpush1.msra.mxu0 %v1347
    %1384 = vmatprep.subr.mxu0 0.0
    %1385 = vmatpush1.msra.mxu0 %v1348
    %1386 = vmatprep.subr.mxu0 0.0
    %1387 = vmatpush1.msra.mxu0 %v1349
    %1388 = vmatprep.subr.mxu0 0.0
    %1389 = vmatpush1.msra.mxu0 %v1350
    %1390 = vmatprep.subr.mxu0 0.0
    %1391 = vmatpush1.msra.mxu0 0.0
    %1392 = vmatprep.subr.mxu0 0.0
    %1393 = vmatpush1.msra.mxu0 0.0
    %1394 = vmatprep.subr.mxu0 0.0
    %1395 = vmatpush1.msra.mxu0 0.0
    %1396 = vmatprep.subr.mxu0 0.0
    %1397 = vmatpush1.msra.mxu0 0.0
    %1398 = vmatprep.subr.mxu0 0.0
    %1399 = vmatpush1.msra.mxu0 0.0
    %1400 = vmatprep.subr.mxu0 0.0
    %1401 = vmatpush1.msra.mxu0 0.0
    %1402 = vmatprep.subr.mxu0 0.0
    %1403 = vmatpush1.msra.mxu0 0.0
    %1404 = vmatprep.subr.mxu0 0.0
    %1405 = vmatpush1.msra.mxu0 0.0
    %1406 = vmatprep.subr.mxu0 0.0
    %1407 = vmatpush1.msra.mxu0 0.0
    %1408 = vmatprep.subr.mxu0 0.0
    %1409 = vmatpush1.msra.mxu0 0.0
    %1410 = vmatprep.subr.mxu0 0.0
    %1411 = vmatpush1.msra.mxu0 0.0
    %1412 = vmatprep.subr.mxu0 0.0
    %1413 = vmatpush1.msra.mxu0 0.0
    %1414 = vmatprep.subr.mxu0 0.0
    %1415 = vmatpush1.msra.mxu0 0.0
    %1416 = vmatprep.subr.mxu0 0.0
    %1417 = vmatpush1.msra.mxu0 0.0
    %1418 = vmatprep.subr.mxu0 0.0
    %1419 = vmatpush1.msra.mxu0 0.0
    %1420 = vmatprep.subr.mxu0 0.0
    %1421 = vmatpush1.msra.mxu0 0.0
    %1422 = vmatprep.mubr.f32.mxu0 0.0
    %1423 = vmatmul.mubr.f32.gmra.mrb[0].mxu0 %v1334
    %v1424 = vpop.f32.mrb[0].mxu0
    %v1425 = vadd.f32 %v1356, %v1424
    %v1426 = vpop.f32.mrb[0].mxu0
    %1427 = vdwg.mxu0
    %v1428 = vmax.f32 %v1425, 0.0
    %v1429 = vld [vmem:[%s14] sm:$0xff]
    %v1430 = vld [vmem:[%s14 + $0x8] sm:$0xff]
    %v1431 = vld [vmem:[%s14 + $0x10] sm:$0xff]
    %v1432 = vld [vmem:[%s14 + $0x18] sm:$0xff]
    %v1433 = vld [vmem:[%s14 + $0x20] sm:$0xff]
    %v1434 = vld [vmem:[%s14 + $0x28] sm:$0xff]
    %v1435 = vld [vmem:[%s14 + $0x30] sm:$0xff]
    %v1436 = vld [vmem:[%s14 + $0x38] sm:$0xff]
    %v1437 = vld [vmem:[#allocation5] sm:$0x1]
    %v1439 = vlaneseq
    %v1440 = vshrl.u32 %v1439, 7
    %v1441 = vsub.s32 0, %v1440
    %v1442 = vrot.slane %v1437, %v1441
    %vm1444 = vcmask 523264
    %v1446 = vsel %vm1444, %v1428, 0
    %1448 = vmatprep.subr.mxu0 0.0
    %1449 = vmatpush1.msra.mxu0 %v1429
    %1450 = vmatprep.subr.mxu0 0.0
    %1451 = vmatpush1.msra.mxu0 %v1430
    %1452 = vmatprep.subr.mxu0 0.0
    %1453 = vmatpush1.msra.mxu0 %v1431
    %1454 = vmatprep.subr.mxu0 0.0
    %1455 = vmatpush1.msra.mxu0 %v1432
    %1456 = vmatprep.subr.mxu0 0.0
    %1457 = vmatpush1.msra.mxu0 %v1433
    %1458 = vmatprep.subr.mxu0 0.0
    %1459 = vmatpush1.msra.mxu0 %v1434
    %1460 = vmatprep.subr.mxu0 0.0
    %1461 = vmatpush1.msra.mxu0 %v1435
    %1462 = vmatprep.subr.mxu0 0.0
    %1463 = vmatpush1.msra.mxu0 %v1436
    %1464 = vmatprep.subr.mxu0 0.0
    %1465 = vmatpush1.msra.mxu0 0.0
    %1466 = vmatprep.subr.mxu0 0.0
    %1467 = vmatpush1.msra.mxu0 0.0
    %1468 = vmatprep.subr.mxu0 0.0
    %1469 = vmatpush1.msra.mxu0 0.0
    %1470 = vmatprep.subr.mxu0 0.0
    %1471 = vmatpush1.msra.mxu0 0.0
    %1472 = vmatprep.subr.mxu0 0.0
    %1473 = vmatpush1.msra.mxu0 0.0
    %1474 = vmatprep.subr.mxu0 0.0
    %1475 = vmatpush1.msra.mxu0 0.0
    %1476 = vmatprep.subr.mxu0 0.0
    %1477 = vmatpush1.msra.mxu0 0.0
    %1478 = vmatprep.subr.mxu0 0.0
    %1479 = vmatpush1.msra.mxu0 0.0
    %1480 = vmatprep.subr.mxu0 0.0
    %1481 = vmatpush1.msra.mxu0 0.0
    %1482 = vmatprep.subr.mxu0 0.0
    %1483 = vmatpush1.msra.mxu0 0.0
    %1484 = vmatprep.subr.mxu0 0.0
    %1485 = vmatpush1.msra.mxu0 0.0
    %1486 = vmatprep.subr.mxu0 0.0
    %1487 = vmatpush1.msra.mxu0 0.0
    %1488 = vmatprep.subr.mxu0 0.0
    %1489 = vmatpush1.msra.mxu0 0.0
    %1490 = vmatprep.subr.mxu0 0.0
    %1491 = vmatpush1.msra.mxu0 0.0
    %1492 = vmatprep.subr.mxu0 0.0
    %1493 = vmatpush1.msra.mxu0 0.0
    %1494 = vmatprep.subr.mxu0 0.0
    %1495 = vmatpush1.msra.mxu0 0.0
    %1496 = vmatprep.subr.mxu0 0.0
    %1497 = vmatpush1.msra.mxu0 0.0
    %1498 = vmatprep.subr.mxu0 0.0
    %1499 = vmatpush1.msra.mxu0 0.0
    %1500 = vmatprep.subr.mxu0 0.0
    %1501 = vmatpush1.msra.mxu0 0.0
    %1502 = vmatprep.subr.mxu0 0.0
    %1503 = vmatpush1.msra.mxu0 0.0
    %1504 = vmatprep.subr.mxu0 0.0
    %1505 = vmatpush1.msra.mxu0 0.0
    %1506 = vmatprep.subr.mxu0 0.0
    %1507 = vmatpush1.msra.mxu0 0.0
    %1508 = vmatprep.subr.mxu0 0.0
    %1509 = vmatpush1.msra.mxu0 0.0
    %1510 = vmatprep.subr.mxu0 0.0
    %1511 = vmatpush1.msra.mxu0 0.0
    %1512 = vmatprep.mubr.f32.mxu0 0.0
    %1513 = vmatmul.mubr.f32.gmra.mrb[0].mxu0 %v1446
    %v1514 = vpop.f32.mrb[0].mxu0
    %v1515 = vadd.f32 %v1442, %v1514
    %v1516 = vpop.f32.mrb[0].mxu0
    %1517 = vdwg.mxu0
    %v1518 = vxor.u32 %v1515, 2147483648
    %v1519 = vmul.f32 %v1518, 1.442695
    %v1520 = vpow.pop %v1519
    %v1521 = vadd.f32 %v1520, 1.0
    %v1522 = vrcp.pop %v1521
    %v1523 = vmul.f32 1.0, %v1522
    %vm1524 = vcmask 7168
    %1525 = vst.msk [vmem:[%s16] sm:$0xff] %vm1524, %v1523
    // Predicated region
    $region66: #{tpu_custom_call.1} parent=1 // pred_check
      _
    $region67: #{tpu_custom_call.1} parent=1 // pred_check_branch
      %1527 = sbr.rel (0) target = $region69
    $region68: #{tpu_custom_call.1} parent=1 // pred_region
      _
    $region69: #{tpu_custom_call.1} parent=1 // pred_fallthru
      _
    // Predicated region
    $region70: #{tpu_custom_call.1} parent=1 // pred_check
      _
    $region71: #{tpu_custom_call.1} parent=1 // pred_check_branch
      %1529 = sbr.rel (0) target = $region73
    $region72: #{tpu_custom_call.1} parent=1 // pred_region
      _
    $region73: #{tpu_custom_call.1} parent=1 // pred_fallthru
      _
    %1530 = vsyncpa [#allocation7], 1

</llo_original>
